<compile_context>
chip_gen: v7x
topology: tpu7x:2x2x1
jax: 0.10.0
libtpu: 0.0.40
codegen_flags: <defaults>
</compile_context>

<pallas_src>
import math

import jax
import jax.numpy as jnp
from jax.experimental import pallas as pl
from jax.experimental.pallas import tpu as pltpu


def _round_up(x, m):
    return ((x + m - 1) // m) * m


# ----------------------------- Pallas kernel ------------------------------- #
def critic_kernel(xs_ref, w1_ref, b1_ref, w2_ref, b2_ref, w3_ref, b3_ref, o_ref):
    # xs_ref: (din, tb) f32   — batch on lanes
    # w1_ref: (h1p, din) bf16, b1_ref: (h1p, 1) f32
    # w2_ref: (h2p, h1p) bf16, b2_ref: (h2p, 1) f32
    # w3_ref: (h2p, 1) f32,    b3_ref: (1, 1) f32
    # o_ref : (1, tb) f32      — lane-dense output row

    # fcs1: single merged matmul over [state | action] (concat done wrapper-
    # side, once, in plain JAX). bf16 operands, f32 accumulation on the MXU.
    xs = xs_ref[...].astype(jnp.bfloat16)
    h1 = jnp.dot(w1_ref[...], xs, preferred_element_type=jnp.float32)      # (h1p, tb)
    h1 = jnp.maximum(h1 + b1_ref[...], 0.0)                                # f32 VPU

    # fc2 + ReLU (hidden widths zero-padded to lane multiples; inert).
    h2 = jnp.dot(w2_ref[...], h1.astype(jnp.bfloat16),
                 preferred_element_type=jnp.float32)                       # (h2p, tb)
    h2 = jnp.maximum(h2 + b2_ref[...], 0.0)                                # f32 VPU

    # fc3 (output width 1): f32 VPU multiply + sublane (XLU) reduce. The
    # batch-on-lanes layout makes the result a lane-dense (1, tb) row.
    q = jnp.sum(h2 * w3_ref[...], axis=0, keepdims=True) + b3_ref[...]     # (1, tb)
    o_ref[...] = q.astype(o_ref.dtype)


# ------------------------ one-time parameter prep -------------------------- #
def prepare_critic_params(params, lane=128):
    """Init-time layout transform (NOT per forward call): keep PyTorch's
    (out, in) weight orientation (it is the natural MXU LHS for the
    transposed compute), zero-pad hidden widths to lane multiples
    (400 -> 512, 300 -> 384), cast the matmul weights to bf16, and reshape
    biases / w3 to (N, 1) columns. Padding is inert: padded rows/cols are
    zero and ReLU(0) = 0."""
    w1, b1, w2, b2, w3, b3 = params
    h1, din = w1.shape
    h2 = w2.shape[0]
    h1p, h2p = _round_up(h1, lane), _round_up(h2, lane)

    w1p = (jnp.zeros((h1p, din), jnp.float32)
           .at[:h1, :].set(jnp.asarray(w1, jnp.float32))
           .astype(jnp.bfloat16))
    b1p = jnp.zeros((h1p, 1), jnp.float32).at[:h1, 0].set(jnp.asarray(b1, jnp.float32))

    w2p = (jnp.zeros((h2p, h1p), jnp.float32)
           .at[:h2, :h1].set(jnp.asarray(w2, jnp.float32))
           .astype(jnp.bfloat16))
    b2p = jnp.zeros((h2p, 1), jnp.float32).at[:h2, 0].set(jnp.asarray(b2, jnp.float32))

    # fc3 stays f32 (VPU multiply + reduce; v5e-safe, negligible bytes).
    w3p = jnp.zeros((h2p, 1), jnp.float32).at[:h2, 0].set(
        jnp.asarray(w3, jnp.float32).reshape(-1))
    b3p = jnp.asarray(b3, jnp.float32).reshape(1, 1)
    return (w1p, b1p, w2p, b2p, w3p, b3p)


# -------------------------------- wrapper ----------------------------------- #
def critic_forward(state, action, prepped, *, batch_tile=512):
    """state: (B, state_size*nb_agents), action: (B, action_size*nb_agents)."""
    w1, b1, w2, b2, w3, b3 = prepped
    h1p, din = w1.shape
    h2p = w2.shape[0]
    B = state.shape[0]

    # Wrapper-side concat + transpose: B*din*4 bytes of glue (noise). Batch
    # lands on the lane axis so the kernel output is lane-dense.
    xs = jnp.concatenate(
        [state.astype(jnp.float32), action.astype(jnp.float32)], axis=1)
    xs_t = xs.T                                                    # (din, B)

    if B < 256:
        # Acting-style batches: single block, no padding (block == full dims).
        tb, bp = B, B
    else:
        # Training batches: tile multiple of 128 lanes, clamped so the grid
        # has >= 2 steps (lets "parallel" shard across both v7x TensorCores).
        tb = min(batch_tile, _round_up((B + 1) // 2, 128))
        bp = _round_up(B, tb)
        if bp != B:
            xs_t = jnp.pad(xs_t, ((0, 0), (0, bp - B)))

    const = lambda i: (0, 0)   # weights / biases stay VMEM-resident
    out = pl.pallas_call(
        critic_kernel,
        out_shape=jax.ShapeDtypeStruct((1, bp), jnp.float32),
        grid=(bp // tb,),
        in_specs=[
            pl.BlockSpec((din, tb), lambda i: (0, i)),   # xs^T batch tile
            pl.BlockSpec((h1p, din), const),             # W1 (bf16)
            pl.BlockSpec((h1p, 1), const),               # b1
            pl.BlockSpec((h2p, h1p), const),             # W2 (bf16)
            pl.BlockSpec((h2p, 1), const),               # b2
            pl.BlockSpec((h2p, 1), const),               # w3 (column)
            pl.BlockSpec((1, 1), const),                 # b3
        ],
        out_specs=pl.BlockSpec((1, tb), lambda i: (0, i)),
        compiler_params=pltpu.CompilerParams(
            dimension_semantics=("parallel",)),
    )(xs_t, w1, b1, w2, b2, w3, b3)
    return out[0, :B].reshape(B, 1)


# ------------------------- deterministic parameters ------------------------ #
def init_critic_params(key, state_size, action_size, nb_agents,
                       fcs1_units=400, fc2_units=300):
    in_dim = (state_size + action_size) * nb_agents
    k = jax.random.split(key, 6)

    def uniform(k_, shape, lim):
        return jax.random.uniform(k_, shape, jnp.float32, -lim, lim)

    # hidden_init in the reference uses weight.size()[0] == out_features.
    lim1 = 1.0 / math.sqrt(fcs1_units)
    lim2 = 1.0 / math.sqrt(fc2_units)

    w1 = uniform(k[0], (fcs1_units, in_dim), lim1)
    b1 = uniform(k[1], (fcs1_units,), 1.0 / math.sqrt(in_dim))
    w2 = uniform(k[2], (fc2_units, fcs1_units), lim2)
    b2 = uniform(k[3], (fc2_units,), 1.0 / math.sqrt(fcs1_units))
    w3 = uniform(k[4], (1, fc2_units), 3e-3)
    b3 = uniform(k[5], (1,), 1.0 / math.sqrt(fc2_units))
    return (w1, b1, w2, b2, w3, b3)


def critic_ref(state, action, params):
    """Pure-JAX f32 reference (original PyTorch layout) for correctness check."""
    w1, b1, w2, b2, w3, b3 = params
    xs = jnp.concatenate([state, action.astype(state.dtype)], axis=1)
    h1 = jnp.maximum(xs @ w1.T + b1, 0.0)
    h2 = jnp.maximum(h1 @ w2.T + b2, 0.0)
    return h2 @ w3.T + b3


# ---------------------------------- main ----------------------------------- #
if __name__ == "__main__":
    # Small, module-consistent shapes.
    state_size, action_size, nb_agents = 8, 4, 2
    fcs1_units, fc2_units = 400, 300

    key = jax.random.PRNGKey(0)
    k_params, k_state, k_action = jax.random.split(key, 3)

    params = init_critic_params(k_params, state_size, action_size, nb_agents,
                                fcs1_units, fc2_units)
    prepped = prepare_critic_params(params)

    # 1) Acting-style tiny batch (single-block path).
    batch = 2
    state = jax.random.normal(k_state, (batch, state_size * nb_agents), jnp.float32)
    action = jax.random.normal(k_action, (batch, action_size * nb_agents), jnp.float32)

    q = jax.block_until_ready(critic_forward(state, action, prepped))
    q_ref = critic_ref(state, action, params)
    assert q.shape == (batch, 1)
    err = float(jnp.max(jnp.abs(q - q_ref)))
    # bf16 MXU operands (f32 accumulate): slightly looser tolerance than pure f32.
    assert err < 5e-3, f"small-batch max abs err {err}"

    # 2) Training-style batch exercising the tiled / padded / 2-step grid path.
    batch2 = 384
    k_s2, k_a2 = jax.random.split(k_state)
    state2 = jax.random.normal(k_s2, (batch2, state_size * nb_agents), jnp.float32)
    action2 = jax.random.normal(k_a2, (batch2, action_size * nb_agents), jnp.float32)

    q2 = jax.block_until_ready(critic_forward(state2, action2, prepped))
    q2_ref = critic_ref(state2, action2, params)
    assert q2.shape == (batch2, 1)
    err2 = float(jnp.max(jnp.abs(q2 - q2_ref)))
    assert err2 < 5e-3, f"tiled-batch max abs err {err2}"

    print("KERNEL_OK")
</pallas_src>

<mosaic_0001>
module attributes {stable_mosaic.version = 11 : i64} {
  func.func @critic_kernel(%arg0: i32, %arg1: memref<24x2xf32, #tpu.memory_space<vmem>>, %arg2: memref<512x24xbf16, #tpu.memory_space<vmem>>, %arg3: memref<512x1xf32, #tpu.memory_space<vmem>>, %arg4: memref<384x512xbf16, #tpu.memory_space<vmem>>, %arg5: memref<384x1xf32, #tpu.memory_space<vmem>>, %arg6: memref<384x1xf32, #tpu.memory_space<vmem>>, %arg7: memref<1x1xf32, #tpu.memory_space<vmem>>, %arg8: memref<1x2xf32, #tpu.memory_space<vmem>>) attributes {dimension_semantics = [#tpu.dimension_semantics<parallel>], iteration_bounds = array<i64: 1>, scalar_prefetch = 0 : i64, scratch_operands = 0 : i64, tpu.core_type = #tpu.core_type<tc>, window_params = [{transform_indices = @transform_0, window_bounds = array<i64: 24, 2>}, {pipeline_mode = #tpu.pipeline_mode<synchronous>, transform_indices = @transform_1, window_bounds = array<i64: 512, 24>}, {pipeline_mode = #tpu.pipeline_mode<synchronous>, transform_indices = @transform_2, window_bounds = array<i64: 512, 1>}, {pipeline_mode = #tpu.pipeline_mode<synchronous>, transform_indices = @transform_3, window_bounds = array<i64: 384, 512>}, {pipeline_mode = #tpu.pipeline_mode<synchronous>, transform_indices = @transform_4, window_bounds = array<i64: 384, 1>}, {pipeline_mode = #tpu.pipeline_mode<synchronous>, transform_indices = @transform_5, window_bounds = array<i64: 384, 1>}, {pipeline_mode = #tpu.pipeline_mode<synchronous>, transform_indices = @transform_6, window_bounds = array<i64: 1, 1>}, {transform_indices = @transform_7, window_bounds = array<i64: 1, 2>}]} {
    %c0 = arith.constant 0 : index
    %c0_0 = arith.constant 0 : index
    %0 = vector.load %arg1[%c0, %c0_0] : memref<24x2xf32, #tpu.memory_space<vmem>>, vector<24x2xf32>
    %1 = arith.truncf %0 : vector<24x2xf32> to vector<24x2xbf16>
    %c0_1 = arith.constant 0 : index
    %c0_2 = arith.constant 0 : index
    %2 = vector.load %arg2[%c0_1, %c0_2] : memref<512x24xbf16, #tpu.memory_space<vmem>>, vector<512x24xbf16>
    %cst = arith.constant dense<0.000000e+00> : vector<512x2xf32>
    %3 = tpu.matmul %2, %1, %cst {dimension_numbers = #tpu.dot_dimension_numbers<[1], [0], [0], [1], [0, 0, 1, 1], [], []>} : vector<512x24xbf16>, vector<24x2xbf16>, vector<512x2xf32> -> vector<512x2xf32>
    %c0_3 = arith.constant 0 : index
    %c0_4 = arith.constant 0 : index
    %4 = vector.load %arg3[%c0_3, %c0_4] : memref<512x1xf32, #tpu.memory_space<vmem>>, vector<512x1xf32>
    %5 = vector.broadcast %4 : vector<512x1xf32> to vector<512x2xf32>
    %6 = arith.addf %3, %5 : vector<512x2xf32>
    %cst_5 = arith.constant 0.000000e+00 : f32
    %7 = vector.broadcast %cst_5 : f32 to vector<512x2xf32>
    %8 = arith.maximumf %6, %7 : vector<512x2xf32>
    %c0_6 = arith.constant 0 : index
    %c0_7 = arith.constant 0 : index
    %9 = vector.load %arg4[%c0_6, %c0_7] : memref<384x512xbf16, #tpu.memory_space<vmem>>, vector<384x512xbf16>
    %10 = arith.truncf %8 : vector<512x2xf32> to vector<512x2xbf16>
    %cst_8 = arith.constant dense<0.000000e+00> : vector<384x2xf32>
    %11 = tpu.matmul %9, %10, %cst_8 {dimension_numbers = #tpu.dot_dimension_numbers<[1], [0], [0], [1], [0, 0, 1, 1], [], []>} : vector<384x512xbf16>, vector<512x2xbf16>, vector<384x2xf32> -> vector<384x2xf32>
    %c0_9 = arith.constant 0 : index
    %c0_10 = arith.constant 0 : index
    %12 = vector.load %arg5[%c0_9, %c0_10] : memref<384x1xf32, #tpu.memory_space<vmem>>, vector<384x1xf32>
    %13 = vector.broadcast %12 : vector<384x1xf32> to vector<384x2xf32>
    %14 = arith.addf %11, %13 : vector<384x2xf32>
    %cst_11 = arith.constant 0.000000e+00 : f32
    %15 = vector.broadcast %cst_11 : f32 to vector<384x2xf32>
    %16 = arith.maximumf %14, %15 : vector<384x2xf32>
    %c0_12 = arith.constant 0 : index
    %c0_13 = arith.constant 0 : index
    %17 = vector.load %arg6[%c0_12, %c0_13] : memref<384x1xf32, #tpu.memory_space<vmem>>, vector<384x1xf32>
    %18 = vector.broadcast %17 : vector<384x1xf32> to vector<384x2xf32>
    %19 = arith.mulf %16, %18 : vector<384x2xf32>
    %cst_14 = arith.constant dense<0.000000e+00> : vector<2xf32>
    %20 = vector.multi_reduction <add>, %19, %cst_14 [0] : vector<384x2xf32> to vector<2xf32>
    %21 = vector.shape_cast %20 : vector<2xf32> to vector<1x2xf32>
    %c0_15 = arith.constant 0 : index
    %c0_16 = arith.constant 0 : index
    %22 = vector.load %arg7[%c0_15, %c0_16] : memref<1x1xf32, #tpu.memory_space<vmem>>, vector<1x1xf32>
    %23 = vector.broadcast %22 : vector<1x1xf32> to vector<1x2xf32>
    %24 = arith.addf %21, %23 : vector<1x2xf32>
    %c0_17 = arith.constant 0 : index
    %c0_18 = arith.constant 0 : index
    %25 = vector.load %arg8[%c0_17, %c0_18] : memref<1x2xf32, #tpu.memory_space<vmem>>, vector<1x2xf32>
    tpu.vector_store %arg8[%c0_17, %c0_18], %24 {strides = array<i32>} : memref<1x2xf32, #tpu.memory_space<vmem>>, vector<1x2xf32>,
    return
  }
  func.func @transform_0(%arg0: i32) -> (i32, i32) {
    %c0_i32 = arith.constant 0 : i32
    %c0_i32_0 = arith.constant 0 : i32
    return %c0_i32, %arg0 : i32, i32
  }
  func.func @transform_1(%arg0: i32) -> (i32, i32) {
    %c0_i32 = arith.constant 0 : i32
    %c0_i32_0 = arith.constant 0 : i32
    %c0_i32_1 = arith.constant 0 : i32
    return %c0_i32, %c0_i32_0 : i32, i32
  }
  func.func @transform_2(%arg0: i32) -> (i32, i32) {
    %c0_i32 = arith.constant 0 : i32
    %c0_i32_0 = arith.constant 0 : i32
    %c0_i32_1 = arith.constant 0 : i32
    return %c0_i32, %c0_i32_0 : i32, i32
  }
  func.func @transform_3(%arg0: i32) -> (i32, i32) {
    %c0_i32 = arith.constant 0 : i32
    %c0_i32_0 = arith.constant 0 : i32
    %c0_i32_1 = arith.constant 0 : i32
    return %c0_i32, %c0_i32_0 : i32, i32
  }
  func.func @transform_4(%arg0: i32) -> (i32, i32) {
    %c0_i32 = arith.constant 0 : i32
    %c0_i32_0 = arith.constant 0 : i32
    %c0_i32_1 = arith.constant 0 : i32
    return %c0_i32, %c0_i32_0 : i32, i32
  }
  func.func @transform_5(%arg0: i32) -> (i32, i32) {
    %c0_i32 = arith.constant 0 : i32
    %c0_i32_0 = arith.constant 0 : i32
    %c0_i32_1 = arith.constant 0 : i32
    return %c0_i32, %c0_i32_0 : i32, i32
  }
  func.func @transform_6(%arg0: i32) -> (i32, i32) {
    %c0_i32 = arith.constant 0 : i32
    %c0_i32_0 = arith.constant 0 : i32
    %c0_i32_1 = arith.constant 0 : i32
    return %c0_i32, %c0_i32_0 : i32, i32
  }
  func.func @transform_7(%arg0: i32) -> (i32, i32) {
    %c0_i32 = arith.constant 0 : i32
    %c0_i32_0 = arith.constant 0 : i32
    return %c0_i32, %arg0 : i32, i32
  }
}

</mosaic_0001>

<llo_original>
// kernel: tpu_custom_call.1
$region0: #{tpu_custom_call.1}
  #allocation0 [shape = 'u32[]', space=smem, size = 0x4, offset = 0x4, fixed_abs, tag = 'smem constant byte address 0x4 - core index']
  #allocation1 [shape = 'u32[144,128]{1,0:T(1,128)}', space=vmem, size = 0x12000, scoped, tag = 'internal scratch']
  #allocation2 [shape = 'f32[1,1]{1,0:T(1,128)S(1)}', space=vmem, size = 0x200, scoped, tag = 'scoped memory for tpu_custom_call.1']
  %s0 = inlined_call_operand.vmem [shape: f32[24,2], index: 0, kind: input, shape index: {}]
  %s1 = inlined_call_operand.vmem [shape: bf16[512,24], index: 1, kind: input, shape index: {}]
  %s2 = inlined_call_operand.vmem [shape: f32[512,1], index: 2, kind: input, shape index: {}]
  %s3 = inlined_call_operand.vmem [shape: bf16[384,512], index: 3, kind: input, shape index: {}]
  %s4 = inlined_call_operand.vmem [shape: f32[384,1], index: 4, kind: input, shape index: {}]
  %s5 = inlined_call_operand.vmem [shape: f32[384,1], index: 5, kind: input, shape index: {}]
  %s6 = inlined_call_operand.<no memory space> [shape: f32[1,1], index: 6, kind: input, shape index: {}]
  %s7 = inlined_call_operand.hbm [shape: f32[1,2], index: 7, kind: output, shape index: {}]
  %s8 = sld [smem:[#allocation0]]
  $region38: #{tpu_custom_call.1} parent=0
    _
  %s10 = ssub.s32 1, %s8
  %s11 = scalar_select 0, %s10, %s8
  %v12 = vstv %s6
  %13 = vst [vmem:[#allocation2] sm:$0x1] %v12
  $region1: #{tpu_custom_call.1} parent=0
    #allocation3 [shape = 'u8[512]{0}', space=vmem, size = 0x400, scoped, tag = 'output window, operand 0, single buffered']
    #allocation4 [shape = 's32[1]{0}', space=sflag, size = 0x4, scoped, tag = 'scoped memory for tpu_custom_call.1']
    %14 = vsyncpa [#allocation4], 0
    // Predicated region
    $region2: #{tpu_custom_call.1} parent=1 // pred_check
      _
    $region3: #{tpu_custom_call.1} parent=1 // pred_check_branch
      %16 = sbr.rel (0) target = $region5
    $region4: #{tpu_custom_call.1} parent=1 // pred_region
      _
    $region5: #{tpu_custom_call.1} parent=1 // pred_fallthru
      _
    // Predicated region
    $region6: #{tpu_custom_call.1} parent=1 // pred_check
      _
    $region7: #{tpu_custom_call.1} parent=1 // pred_check_branch
      %18 = sbr.rel (0) target = $region9
    $region8: #{tpu_custom_call.1} parent=1 // pred_region
      _
    $region9: #{tpu_custom_call.1} parent=1 // pred_fallthru
      _
    // Predicated region
    $region10: #{tpu_custom_call.1} parent=1 // pred_check
      _
    $region11: #{tpu_custom_call.1} parent=1 // pred_check_branch
      %20 = sbr.rel (0) target = $region13
    $region12: #{tpu_custom_call.1} parent=1 // pred_region
      _
    $region13: #{tpu_custom_call.1} parent=1 // pred_fallthru
      _
    // Predicated region
    $region14: #{tpu_custom_call.1} parent=1 // pred_check
      _
    $region15: #{tpu_custom_call.1} parent=1 // pred_check_branch
      %22 = sbr.rel (0) target = $region17
    $region16: #{tpu_custom_call.1} parent=1 // pred_region
      _
    $region17: #{tpu_custom_call.1} parent=1 // pred_fallthru
      _
    // Predicated region
    $region18: #{tpu_custom_call.1} parent=1 // pred_check
      _
    $region19: #{tpu_custom_call.1} parent=1 // pred_check_branch
      %24 = sbr.rel (0) target = $region21
    $region20: #{tpu_custom_call.1} parent=1 // pred_region
      _
    $region21: #{tpu_custom_call.1} parent=1 // pred_fallthru
      _
    // Predicated region
    $region22: #{tpu_custom_call.1} parent=1 // pred_check
      _
    $region23: #{tpu_custom_call.1} parent=1 // pred_check_branch
      %26 = sbr.rel (0) target = $region25
    $region24: #{tpu_custom_call.1} parent=1 // pred_region
      _
    $region25: #{tpu_custom_call.1} parent=1 // pred_fallthru
      _
    // Predicated region
    $region26: #{tpu_custom_call.1} parent=1 // pred_check
      _
    $region27: #{tpu_custom_call.1} parent=1 // pred_check_branch
      %28 = sbr.rel (0) target = $region29
    $region28: #{tpu_custom_call.1} parent=1 // pred_region
      _
    $region29: #{tpu_custom_call.1} parent=1 // pred_fallthru
      _
    %v30 = vld [vmem:[%s0] sm:$0xff]
    %v31 = vld [vmem:[%s0 + $0x8] sm:$0xff]
    %v32 = vld [vmem:[%s0 + $0x10] sm:$0xff]
    %v33 = vpack.c.bf16 %v31, %v30
    %v34 = vpack.c.bf16 %v32, %v32
    %v35 = vld [vmem:[%s1] sm:$0xf]
    %v36 = vld [vmem:[%s1 + $0x4] sm:$0xf]
    %v37 = vld [vmem:[%s1 + $0x8] sm:$0xf]
    %v38 = vld [vmem:[%s1 + $0xc] sm:$0xf]
    %v39 = vld [vmem:[%s1 + $0x10] sm:$0xf]
    %v40 = vld [vmem:[%s1 + $0x14] sm:$0xf]
    %v41 = vld [vmem:[%s1 + $0x18] sm:$0xf]
    %v42 = vld [vmem:[%s1 + $0x1c] sm:$0xf]
    %v43 = vld [vmem:[%s1 + $0x20] sm:$0xf]
    %v44 = vld [vmem:[%s1 + $0x24] sm:$0xf]
    %v45 = vld [vmem:[%s1 + $0x28] sm:$0xf]
    %v46 = vld [vmem:[%s1 + $0x2c] sm:$0xf]
    %v47 = vld [vmem:[%s1 + $0x30] sm:$0xf]
    %v48 = vld [vmem:[%s1 + $0x34] sm:$0xf]
    %v49 = vld [vmem:[%s1 + $0x38] sm:$0xf]
    %v50 = vld [vmem:[%s1 + $0x3c] sm:$0xf]
    %v51 = vld [vmem:[%s1 + $0x40] sm:$0xf]
    %v52 = vld [vmem:[%s1 + $0x44] sm:$0xf]
    %v53 = vld [vmem:[%s1 + $0x48] sm:$0xf]
    %v54 = vld [vmem:[%s1 + $0x4c] sm:$0xf]
    %v55 = vld [vmem:[%s1 + $0x50] sm:$0xf]
    %v56 = vld [vmem:[%s1 + $0x54] sm:$0xf]
    %v57 = vld [vmem:[%s1 + $0x58] sm:$0xf]
    %v58 = vld [vmem:[%s1 + $0x5c] sm:$0xf]
    %v59 = vld [vmem:[%s1 + $0x60] sm:$0xf]
    %v60 = vld [vmem:[%s1 + $0x64] sm:$0xf]
    %v61 = vld [vmem:[%s1 + $0x68] sm:$0xf]
    %v62 = vld [vmem:[%s1 + $0x6c] sm:$0xf]
    %v63 = vld [vmem:[%s1 + $0x70] sm:$0xf]
    %v64 = vld [vmem:[%s1 + $0x74] sm:$0xf]
    %v65 = vld [vmem:[%s1 + $0x78] sm:$0xf]
    %v66 = vld [vmem:[%s1 + $0x7c] sm:$0xf]
    %v67 = vld [vmem:[%s1 + $0x80] sm:$0xf]
    %v68 = vld [vmem:[%s1 + $0x84] sm:$0xf]
    %v69 = vld [vmem:[%s1 + $0x88] sm:$0xf]
    %v70 = vld [vmem:[%s1 + $0x8c] sm:$0xf]
    %v71 = vld [vmem:[%s1 + $0x90] sm:$0xf]
    %v72 = vld [vmem:[%s1 + $0x94] sm:$0xf]
    %v73 = vld [vmem:[%s1 + $0x98] sm:$0xf]
    %v74 = vld [vmem:[%s1 + $0x9c] sm:$0xf]
    %v75 = vld [vmem:[%s1 + $0xa0] sm:$0xf]
    %v76 = vld [vmem:[%s1 + $0xa4] sm:$0xf]
    %v77 = vld [vmem:[%s1 + $0xa8] sm:$0xf]
    %v78 = vld [vmem:[%s1 + $0xac] sm:$0xf]
    %v79 = vld [vmem:[%s1 + $0xb0] sm:$0xf]
    %v80 = vld [vmem:[%s1 + $0xb4] sm:$0xf]
    %v81 = vld [vmem:[%s1 + $0xb8] sm:$0xf]
    %v82 = vld [vmem:[%s1 + $0xbc] sm:$0xf]
    %v83 = vld [vmem:[%s1 + $0xc0] sm:$0xf]
    %v84 = vld [vmem:[%s1 + $0xc4] sm:$0xf]
    %v85 = vld [vmem:[%s1 + $0xc8] sm:$0xf]
    %v86 = vld [vmem:[%s1 + $0xcc] sm:$0xf]
    %v87 = vld [vmem:[%s1 + $0xd0] sm:$0xf]
    %v88 = vld [vmem:[%s1 + $0xd4] sm:$0xf]
    %v89 = vld [vmem:[%s1 + $0xd8] sm:$0xf]
    %v90 = vld [vmem:[%s1 + $0xdc] sm:$0xf]
    %v91 = vld [vmem:[%s1 + $0xe0] sm:$0xf]
    %v92 = vld [vmem:[%s1 + $0xe4] sm:$0xf]
    %v93 = vld [vmem:[%s1 + $0xe8] sm:$0xf]
    %v94 = vld [vmem:[%s1 + $0xec] sm:$0xf]
    %v95 = vld [vmem:[%s1 + $0xf0] sm:$0xf]
    %v96 = vld [vmem:[%s1 + $0xf4] sm:$0xf]
    %v97 = vld [vmem:[%s1 + $0xf8] sm:$0xf]
    %v98 = vld [vmem:[%s1 + $0xfc] sm:$0xf]
    %v99 = vld [vmem:[%s2] sm:$0xff]
    %v100 = vld [vmem:[%s2 + $0x8] sm:$0xff]
    %v101 = vld [vmem:[%s2 + $0x10] sm:$0xff]
    %v102 = vld [vmem:[%s2 + $0x18] sm:$0xff]
    %v103 = vld [vmem:[%s2 + $0x20] sm:$0xff]
    %v104 = vld [vmem:[%s2 + $0x28] sm:$0xff]
    %v105 = vld [vmem:[%s2 + $0x30] sm:$0xff]
    %v106 = vld [vmem:[%s2 + $0x38] sm:$0xff]
    %v107 = vld [vmem:[%s2 + $0x40] sm:$0xff]
    %v108 = vld [vmem:[%s2 + $0x48] sm:$0xff]
    %v109 = vld [vmem:[%s2 + $0x50] sm:$0xff]
    %v110 = vld [vmem:[%s2 + $0x58] sm:$0xff]
    %v111 = vld [vmem:[%s2 + $0x60] sm:$0xff]
    %v112 = vld [vmem:[%s2 + $0x68] sm:$0xff]
    %v113 = vld [vmem:[%s2 + $0x70] sm:$0xff]
    %v114 = vld [vmem:[%s2 + $0x78] sm:$0xff]
    %v115 = vld [vmem:[%s2 + $0x80] sm:$0xff]
    %v116 = vld [vmem:[%s2 + $0x88] sm:$0xff]
    %v117 = vld [vmem:[%s2 + $0x90] sm:$0xff]
    %v118 = vld [vmem:[%s2 + $0x98] sm:$0xff]
    %v119 = vld [vmem:[%s2 + $0xa0] sm:$0xff]
    %v120 = vld [vmem:[%s2 + $0xa8] sm:$0xff]
    %v121 = vld [vmem:[%s2 + $0xb0] sm:$0xff]
    %v122 = vld [vmem:[%s2 + $0xb8] sm:$0xff]
    %v123 = vld [vmem:[%s2 + $0xc0] sm:$0xff]
    %v124 = vld [vmem:[%s2 + $0xc8] sm:$0xff]
    %v125 = vld [vmem:[%s2 + $0xd0] sm:$0xff]
    %v126 = vld [vmem:[%s2 + $0xd8] sm:$0xff]
    %v127 = vld [vmem:[%s2 + $0xe0] sm:$0xff]
    %v128 = vld [vmem:[%s2 + $0xe8] sm:$0xff]
    %v129 = vld [vmem:[%s2 + $0xf0] sm:$0xff]
    %v130 = vld [vmem:[%s2 + $0xf8] sm:$0xff]
    %v131 = vld [vmem:[%s2 + $0x100] sm:$0xff]
    %v132 = vld [vmem:[%s2 + $0x108] sm:$0xff]
    %v133 = vld [vmem:[%s2 + $0x110] sm:$0xff]
    %v134 = vld [vmem:[%s2 + $0x118] sm:$0xff]
    %v135 = vld [vmem:[%s2 + $0x120] sm:$0xff]
    %v136 = vld [vmem:[%s2 + $0x128] sm:$0xff]
    %v137 = vld [vmem:[%s2 + $0x130] sm:$0xff]
    %v138 = vld [vmem:[%s2 + $0x138] sm:$0xff]
    %v139 = vld [vmem:[%s2 + $0x140] sm:$0xff]
    %v140 = vld [vmem:[%s2 + $0x148] sm:$0xff]
    %v141 = vld [vmem:[%s2 + $0x150] sm:$0xff]
    %v142 = vld [vmem:[%s2 + $0x158] sm:$0xff]
    %v143 = vld [vmem:[%s2 + $0x160] sm:$0xff]
    %v144 = vld [vmem:[%s2 + $0x168] sm:$0xff]
    %v145 = vld [vmem:[%s2 + $0x170] sm:$0xff]
    %v146 = vld [vmem:[%s2 + $0x178] sm:$0xff]
    %v147 = vld [vmem:[%s2 + $0x180] sm:$0xff]
    %v148 = vld [vmem:[%s2 + $0x188] sm:$0xff]
    %v149 = vld [vmem:[%s2 + $0x190] sm:$0xff]
    %v150 = vld [vmem:[%s2 + $0x198] sm:$0xff]
    %v151 = vld [vmem:[%s2 + $0x1a0] sm:$0xff]
    %v152 = vld [vmem:[%s2 + $0x1a8] sm:$0xff]
    %v153 = vld [vmem:[%s2 + $0x1b0] sm:$0xff]
    %v154 = vld [vmem:[%s2 + $0x1b8] sm:$0xff]
    %v155 = vld [vmem:[%s2 + $0x1c0] sm:$0xff]
    %v156 = vld [vmem:[%s2 + $0x1c8] sm:$0xff]
    %v157 = vld [vmem:[%s2 + $0x1d0] sm:$0xff]
    %v158 = vld [vmem:[%s2 + $0x1d8] sm:$0xff]
    %v159 = vld [vmem:[%s2 + $0x1e0] sm:$0xff]
    %v160 = vld [vmem:[%s2 + $0x1e8] sm:$0xff]
    %v161 = vld [vmem:[%s2 + $0x1f0] sm:$0xff]
    %v162 = vld [vmem:[%s2 + $0x1f8] sm:$0xff]
    %164 = vset.pattern.permute.xlu0 0
    %165 = vperm.xlu0 %164, %v99
    %v166 = vpop.permute.xlu0 %165
    %169 = vset.pattern.permute.xlu0 0
    %170 = vperm.xlu0 %169, %v100
    %v171 = vpop.permute.xlu0 %170
    %174 = vset.pattern.permute.xlu0 0
    %175 = vperm.xlu0 %174, %v101
    %v176 = vpop.permute.xlu0 %175
    %179 = vset.pattern.permute.xlu0 0
    %180 = vperm.xlu0 %179, %v102
    %v181 = vpop.permute.xlu0 %180
    %184 = vset.pattern.permute.xlu0 0
    %185 = vperm.xlu0 %184, %v103
    %v186 = vpop.permute.xlu0 %185
    %189 = vset.pattern.permute.xlu0 0
    %190 = vperm.xlu0 %189, %v104
    %v191 = vpop.permute.xlu0 %190
    %194 = vset.pattern.permute.xlu0 0
    %195 = vperm.xlu0 %194, %v105
    %v196 = vpop.permute.xlu0 %195
    %199 = vset.pattern.permute.xlu0 0
    %200 = vperm.xlu0 %199, %v106
    %v201 = vpop.permute.xlu0 %200
    %204 = vset.pattern.permute.xlu0 0
    %205 = vperm.xlu0 %204, %v107
    %v206 = vpop.permute.xlu0 %205
    %209 = vset.pattern.permute.xlu0 0
    %210 = vperm.xlu0 %209, %v108
    %v211 = vpop.permute.xlu0 %210
    %214 = vset.pattern.permute.xlu0 0
    %215 = vperm.xlu0 %214, %v109
    %v216 = vpop.permute.xlu0 %215
    %219 = vset.pattern.permute.xlu0 0
    %220 = vperm.xlu0 %219, %v110
    %v221 = vpop.permute.xlu0 %220
    %224 = vset.pattern.permute.xlu0 0
    %225 = vperm.xlu0 %224, %v111
    %v226 = vpop.permute.xlu0 %225
    %229 = vset.pattern.permute.xlu0 0
    %230 = vperm.xlu0 %229, %v112
    %v231 = vpop.permute.xlu0 %230
    %234 = vset.pattern.permute.xlu0 0
    %235 = vperm.xlu0 %234, %v113
    %v236 = vpop.permute.xlu0 %235
    %239 = vset.pattern.permute.xlu0 0
    %240 = vperm.xlu0 %239, %v114
    %v241 = vpop.permute.xlu0 %240
    %244 = vset.pattern.permute.xlu0 0
    %245 = vperm.xlu0 %244, %v115
    %v246 = vpop.permute.xlu0 %245
    %249 = vset.pattern.permute.xlu0 0
    %250 = vperm.xlu0 %249, %v116
    %v251 = vpop.permute.xlu0 %250
    %254 = vset.pattern.permute.xlu0 0
    %255 = vperm.xlu0 %254, %v117
    %v256 = vpop.permute.xlu0 %255
    %259 = vset.pattern.permute.xlu0 0
    %260 = vperm.xlu0 %259, %v118
    %v261 = vpop.permute.xlu0 %260
    %264 = vset.pattern.permute.xlu0 0
    %265 = vperm.xlu0 %264, %v119
    %v266 = vpop.permute.xlu0 %265
    %269 = vset.pattern.permute.xlu0 0
    %270 = vperm.xlu0 %269, %v120
    %v271 = vpop.permute.xlu0 %270
    %274 = vset.pattern.permute.xlu0 0
    %275 = vperm.xlu0 %274, %v121
    %v276 = vpop.permute.xlu0 %275
    %279 = vset.pattern.permute.xlu0 0
    %280 = vperm.xlu0 %279, %v122
    %v281 = vpop.permute.xlu0 %280
    %284 = vset.pattern.permute.xlu0 0
    %285 = vperm.xlu0 %284, %v123
    %v286 = vpop.permute.xlu0 %285
    %289 = vset.pattern.permute.xlu0 0
    %290 = vperm.xlu0 %289, %v124
    %v291 = vpop.permute.xlu0 %290
    %294 = vset.pattern.permute.xlu0 0
    %295 = vperm.xlu0 %294, %v125
    %v296 = vpop.permute.xlu0 %295
    %299 = vset.pattern.permute.xlu0 0
    %300 = vperm.xlu0 %299, %v126
    %v301 = vpop.permute.xlu0 %300
    %304 = vset.pattern.permute.xlu0 0
    %305 = vperm.xlu0 %304, %v127
    %v306 = vpop.permute.xlu0 %305
    %309 = vset.pattern.permute.xlu0 0
    %310 = vperm.xlu0 %309, %v128
    %v311 = vpop.permute.xlu0 %310
    %314 = vset.pattern.permute.xlu0 0
    %315 = vperm.xlu0 %314, %v129
    %v316 = vpop.permute.xlu0 %315
    %319 = vset.pattern.permute.xlu0 0
    %320 = vperm.xlu0 %319, %v130
    %v321 = vpop.permute.xlu0 %320
    %324 = vset.pattern.permute.xlu0 0
    %325 = vperm.xlu0 %324, %v131
    %v326 = vpop.permute.xlu0 %325
    %329 = vset.pattern.permute.xlu0 0
    %330 = vperm.xlu0 %329, %v132
    %v331 = vpop.permute.xlu0 %330
    %334 = vset.pattern.permute.xlu0 0
    %335 = vperm.xlu0 %334, %v133
    %v336 = vpop.permute.xlu0 %335
    %339 = vset.pattern.permute.xlu0 0
    %340 = vperm.xlu0 %339, %v134
    %v341 = vpop.permute.xlu0 %340
    %344 = vset.pattern.permute.xlu0 0
    %345 = vperm.xlu0 %344, %v135
    %v346 = vpop.permute.xlu0 %345
    %349 = vset.pattern.permute.xlu0 0
    %350 = vperm.xlu0 %349, %v136
    %v351 = vpop.permute.xlu0 %350
    %354 = vset.pattern.permute.xlu0 0
    %355 = vperm.xlu0 %354, %v137
    %v356 = vpop.permute.xlu0 %355
    %359 = vset.pattern.permute.xlu0 0
    %360 = vperm.xlu0 %359, %v138
    %v361 = vpop.permute.xlu0 %360
    %364 = vset.pattern.permute.xlu0 0
    %365 = vperm.xlu0 %364, %v139
    %v366 = vpop.permute.xlu0 %365
    %369 = vset.pattern.permute.xlu0 0
    %370 = vperm.xlu0 %369, %v140
    %v371 = vpop.permute.xlu0 %370
    %374 = vset.pattern.permute.xlu0 0
    %375 = vperm.xlu0 %374, %v141
    %v376 = vpop.permute.xlu0 %375
    %379 = vset.pattern.permute.xlu0 0
    %380 = vperm.xlu0 %379, %v142
    %v381 = vpop.permute.xlu0 %380
    %384 = vset.pattern.permute.xlu0 0
    %385 = vperm.xlu0 %384, %v143
    %v386 = vpop.permute.xlu0 %385
    %389 = vset.pattern.permute.xlu0 0
    %390 = vperm.xlu0 %389, %v144
    %v391 = vpop.permute.xlu0 %390
    %394 = vset.pattern.permute.xlu0 0
    %395 = vperm.xlu0 %394, %v145
    %v396 = vpop.permute.xlu0 %395
    %399 = vset.pattern.permute.xlu0 0
    %400 = vperm.xlu0 %399, %v146
    %v401 = vpop.permute.xlu0 %400
    %404 = vset.pattern.permute.xlu0 0
    %405 = vperm.xlu0 %404, %v147
    %v406 = vpop.permute.xlu0 %405
    %409 = vset.pattern.permute.xlu0 0
    %410 = vperm.xlu0 %409, %v148
    %v411 = vpop.permute.xlu0 %410
    %414 = vset.pattern.permute.xlu0 0
    %415 = vperm.xlu0 %414, %v149
    %v416 = vpop.permute.xlu0 %415
    %419 = vset.pattern.permute.xlu0 0
    %420 = vperm.xlu0 %419, %v150
    %v421 = vpop.permute.xlu0 %420
    %424 = vset.pattern.permute.xlu0 0
    %425 = vperm.xlu0 %424, %v151
    %v426 = vpop.permute.xlu0 %425
    %429 = vset.pattern.permute.xlu0 0
    %430 = vperm.xlu0 %429, %v152
    %v431 = vpop.permute.xlu0 %430
    %434 = vset.pattern.permute.xlu0 0
    %435 = vperm.xlu0 %434, %v153
    %v436 = vpop.permute.xlu0 %435
    %439 = vset.pattern.permute.xlu0 0
    %440 = vperm.xlu0 %439, %v154
    %v441 = vpop.permute.xlu0 %440
    %444 = vset.pattern.permute.xlu0 0
    %445 = vperm.xlu0 %444, %v155
    %v446 = vpop.permute.xlu0 %445
    %449 = vset.pattern.permute.xlu0 0
    %450 = vperm.xlu0 %449, %v156
    %v451 = vpop.permute.xlu0 %450
    %454 = vset.pattern.permute.xlu0 0
    %455 = vperm.xlu0 %454, %v157
    %v456 = vpop.permute.xlu0 %455
    %459 = vset.pattern.permute.xlu0 0
    %460 = vperm.xlu0 %459, %v158
    %v461 = vpop.permute.xlu0 %460
    %464 = vset.pattern.permute.xlu0 0
    %465 = vperm.xlu0 %464, %v159
    %v466 = vpop.permute.xlu0 %465
    %469 = vset.pattern.permute.xlu0 0
    %470 = vperm.xlu0 %469, %v160
    %v471 = vpop.permute.xlu0 %470
    %474 = vset.pattern.permute.xlu0 0
    %475 = vperm.xlu0 %474, %v161
    %v476 = vpop.permute.xlu0 %475
    %479 = vset.pattern.permute.xlu0 0
    %480 = vperm.xlu0 %479, %v162
    %v481 = vpop.permute.xlu0 %480
    %v547 = vunpack.c.l.b16 %v35
    %v548 = vunpack.c.l.b16 %v36
    %v549 = vunpack.c.l.b16 %v37
    %v550 = vunpack.c.l.b16 %v38
    %v551 = vunpack.c.l.b16 %v39
    %v552 = vunpack.c.l.b16 %v40
    %v553 = vunpack.c.l.b16 %v41
    %v554 = vunpack.c.l.b16 %v42
    %v555 = vunpack.c.l.b16 %v43
    %v556 = vunpack.c.l.b16 %v44
    %v557 = vunpack.c.l.b16 %v45
    %v558 = vunpack.c.l.b16 %v46
    %v559 = vunpack.c.l.b16 %v47
    %v560 = vunpack.c.l.b16 %v48
    %v561 = vunpack.c.l.b16 %v49
    %v562 = vunpack.c.l.b16 %v50
    %v563 = vunpack.c.l.b16 %v51
    %v564 = vunpack.c.l.b16 %v52
    %v565 = vunpack.c.l.b16 %v53
    %v566 = vunpack.c.l.b16 %v54
    %v567 = vunpack.c.l.b16 %v55
    %v568 = vunpack.c.l.b16 %v56
    %v569 = vunpack.c.l.b16 %v57
    %v570 = vunpack.c.l.b16 %v58
    %v571 = vunpack.c.l.b16 %v59
    %v572 = vunpack.c.l.b16 %v60
    %v573 = vunpack.c.l.b16 %v61
    %v574 = vunpack.c.l.b16 %v62
    %v575 = vunpack.c.l.b16 %v63
    %v576 = vunpack.c.l.b16 %v64
    %v577 = vunpack.c.l.b16 %v65
    %v578 = vunpack.c.l.b16 %v66
    %v579 = vunpack.c.l.b16 %v67
    %v580 = vunpack.c.l.b16 %v68
    %v581 = vunpack.c.l.b16 %v69
    %v582 = vunpack.c.l.b16 %v70
    %v583 = vunpack.c.l.b16 %v71
    %v584 = vunpack.c.l.b16 %v72
    %v585 = vunpack.c.l.b16 %v73
    %v586 = vunpack.c.l.b16 %v74
    %v587 = vunpack.c.l.b16 %v75
    %v588 = vunpack.c.l.b16 %v76
    %v589 = vunpack.c.l.b16 %v77
    %v590 = vunpack.c.l.b16 %v78
    %v591 = vunpack.c.l.b16 %v79
    %v592 = vunpack.c.l.b16 %v80
    %v593 = vunpack.c.l.b16 %v81
    %v594 = vunpack.c.l.b16 %v82
    %v595 = vunpack.c.l.b16 %v83
    %v596 = vunpack.c.l.b16 %v84
    %v597 = vunpack.c.l.b16 %v85
    %v598 = vunpack.c.l.b16 %v86
    %v599 = vunpack.c.l.b16 %v87
    %v600 = vunpack.c.l.b16 %v88
    %v601 = vunpack.c.l.b16 %v89
    %v602 = vunpack.c.l.b16 %v90
    %v603 = vunpack.c.l.b16 %v91
    %v604 = vunpack.c.l.b16 %v92
    %v605 = vunpack.c.l.b16 %v93
    %v606 = vunpack.c.l.b16 %v94
    %v607 = vunpack.c.l.b16 %v95
    %v608 = vunpack.c.l.b16 %v96
    %v609 = vunpack.c.l.b16 %v97
    %v610 = vunpack.c.l.b16 %v98
    %v611 = vpack.c.b16 %v548, %v547
    %v612 = vpack.c.b16 %v550, %v549
    %v613 = vpack.c.b16 %v552, %v551
    %v614 = vpack.c.b16 %v554, %v553
    %v615 = vpack.c.b16 %v556, %v555
    %v616 = vpack.c.b16 %v558, %v557
    %v617 = vpack.c.b16 %v560, %v559
    %v618 = vpack.c.b16 %v562, %v561
    %v619 = vpack.c.b16 %v564, %v563
    %v620 = vpack.c.b16 %v566, %v565
    %v621 = vpack.c.b16 %v568, %v567
    %v622 = vpack.c.b16 %v570, %v569
    %v623 = vpack.c.b16 %v572, %v571
    %v624 = vpack.c.b16 %v574, %v573
    %v625 = vpack.c.b16 %v576, %v575
    %v626 = vpack.c.b16 %v578, %v577
    %v627 = vpack.c.b16 %v580, %v579
    %v628 = vpack.c.b16 %v582, %v581
    %v629 = vpack.c.b16 %v584, %v583
    %v630 = vpack.c.b16 %v586, %v585
    %v631 = vpack.c.b16 %v588, %v587
    %v632 = vpack.c.b16 %v590, %v589
    %v633 = vpack.c.b16 %v592, %v591
    %v634 = vpack.c.b16 %v594, %v593
    %v635 = vpack.c.b16 %v596, %v595
    %v636 = vpack.c.b16 %v598, %v597
    %v637 = vpack.c.b16 %v600, %v599
    %v638 = vpack.c.b16 %v602, %v601
    %v639 = vpack.c.b16 %v604, %v603
    %v640 = vpack.c.b16 %v606, %v605
    %v641 = vpack.c.b16 %v608, %v607
    %v642 = vpack.c.b16 %v610, %v609
    %vm643 = vcmask 195584
    %v645 = vsel %vm643, %v611, 0
    %v648 = vsel %vm643, %v612, 0
    %v651 = vsel %vm643, %v613, 0
    %v654 = vsel %vm643, %v614, 0
    %v657 = vsel %vm643, %v615, 0
    %v660 = vsel %vm643, %v616, 0
    %v663 = vsel %vm643, %v617, 0
    %v666 = vsel %vm643, %v618, 0
    %v669 = vsel %vm643, %v619, 0
    %v672 = vsel %vm643, %v620, 0
    %v675 = vsel %vm643, %v621, 0
    %v678 = vsel %vm643, %v622, 0
    %v681 = vsel %vm643, %v623, 0
    %v684 = vsel %vm643, %v624, 0
    %v687 = vsel %vm643, %v625, 0
    %v690 = vsel %vm643, %v626, 0
    %v693 = vsel %vm643, %v627, 0
    %v696 = vsel %vm643, %v628, 0
    %v699 = vsel %vm643, %v629, 0
    %v702 = vsel %vm643, %v630, 0
    %v705 = vsel %vm643, %v631, 0
    %v708 = vsel %vm643, %v632, 0
    %v711 = vsel %vm643, %v633, 0
    %v714 = vsel %vm643, %v634, 0
    %v717 = vsel %vm643, %v635, 0
    %v720 = vsel %vm643, %v636, 0
    %v723 = vsel %vm643, %v637, 0
    %v726 = vsel %vm643, %v638, 0
    %v729 = vsel %vm643, %v639, 0
    %v732 = vsel %vm643, %v640, 0
    %v735 = vsel %vm643, %v641, 0
    %v738 = vsel %vm643, %v642, 0
    %vm740 = vcmask 1043456
    %v742 = vsel %vm740, %v34, 0
    %744 = vmatprep.subr.bf16.mxu0 0
    %745 = vmatpush1.bf16.msra.mxu0 %v33
    %746 = vmatprep.subr.bf16.mxu0 0
    %747 = vmatpush1.bf16.msra.mxu0 %v742
    %748 = vmatprep.subr.bf16.mxu0 0
    %749 = vmatpush1.bf16.msra.mxu0 0
    %750 = vmatprep.subr.bf16.mxu0 0
    %751 = vmatpush1.bf16.msra.mxu0 0
    %752 = vmatprep.subr.bf16.mxu0 0
    %753 = vmatpush1.bf16.msra.mxu0 0
    %754 = vmatprep.subr.bf16.mxu0 0
    %755 = vmatpush1.bf16.msra.mxu0 0
    %756 = vmatprep.subr.bf16.mxu0 0
    %757 = vmatpush1.bf16.msra.mxu0 0
    %758 = vmatprep.subr.bf16.mxu0 0
    %759 = vmatpush1.bf16.msra.mxu0 0
    %760 = vmatprep.subr.bf16.mxu0 0
    %761 = vmatpush1.bf16.msra.mxu0 0
    %762 = vmatprep.subr.bf16.mxu0 0
    %763 = vmatpush1.bf16.msra.mxu0 0
    %764 = vmatprep.subr.bf16.mxu0 0
    %765 = vmatpush1.bf16.msra.mxu0 0
    %766 = vmatprep.subr.bf16.mxu0 0
    %767 = vmatpush1.bf16.msra.mxu0 0
    %768 = vmatprep.subr.bf16.mxu0 0
    %769 = vmatpush1.bf16.msra.mxu0 0
    %770 = vmatprep.subr.bf16.mxu0 0
    %771 = vmatpush1.bf16.msra.mxu0 0
    %772 = vmatprep.subr.bf16.mxu0 0
    %773 = vmatpush1.bf16.msra.mxu0 0
    %774 = vmatprep.subr.bf16.mxu0 0
    %775 = vmatpush1.bf16.msra.mxu0 0
    %776 = vmatprep.mubr.bf16.mxu0 0
    %777 = vmatmul.mubr.bf16.gmra.mrb[0].mxu0 %v645
    %v778 = vpop.f32.mrb[0].mxu0
    %v779 = vadd.f32 %v166, %v778
    %v780 = vpop.f32.mrb[0].mxu0
    %v781 = vpop.f32.mrb[0].mxu0
    %v782 = vadd.f32 %v171, %v781
    %v783 = vpop.f32.mrb[0].mxu0
    %784 = vmatprep.mubr.bf16.mxu0 0
    %785 = vmatmul.mubr.bf16.gmra.mrb[0].mxu0 %v648
    %v786 = vpop.f32.mrb[0].mxu0
    %v787 = vadd.f32 %v176, %v786
    %v788 = vpop.f32.mrb[0].mxu0
    %v789 = vpop.f32.mrb[0].mxu0
    %v790 = vadd.f32 %v181, %v789
    %v791 = vpop.f32.mrb[0].mxu0
    %792 = vmatprep.mubr.bf16.mxu0 0
    %793 = vmatmul.mubr.bf16.gmra.mrb[0].mxu0 %v651
    %v794 = vpop.f32.mrb[0].mxu0
    %v795 = vadd.f32 %v186, %v794
    %v796 = vpop.f32.mrb[0].mxu0
    %v797 = vpop.f32.mrb[0].mxu0
    %v798 = vadd.f32 %v191, %v797
    %v799 = vpop.f32.mrb[0].mxu0
    %800 = vmatprep.mubr.bf16.mxu0 0
    %801 = vmatmul.mubr.bf16.gmra.mrb[0].mxu0 %v654
    %v802 = vpop.f32.mrb[0].mxu0
    %v803 = vadd.f32 %v196, %v802
    %v804 = vpop.f32.mrb[0].mxu0
    %v805 = vpop.f32.mrb[0].mxu0
    %v806 = vadd.f32 %v201, %v805
    %v807 = vpop.f32.mrb[0].mxu0
    %808 = vmatprep.mubr.bf16.mxu0 0
    %809 = vmatmul.mubr.bf16.gmra.mrb[0].mxu0 %v657
    %v810 = vpop.f32.mrb[0].mxu0
    %v811 = vadd.f32 %v206, %v810
    %v812 = vpop.f32.mrb[0].mxu0
    %v813 = vpop.f32.mrb[0].mxu0
    %v814 = vadd.f32 %v211, %v813
    %v815 = vpop.f32.mrb[0].mxu0
    %816 = vmatprep.mubr.bf16.mxu0 0
    %817 = vmatmul.mubr.bf16.gmra.mrb[0].mxu0 %v660
    %v818 = vpop.f32.mrb[0].mxu0
    %v819 = vadd.f32 %v216, %v818
    %v820 = vpop.f32.mrb[0].mxu0
    %v821 = vpop.f32.mrb[0].mxu0
    %v822 = vadd.f32 %v221, %v821
    %v823 = vpop.f32.mrb[0].mxu0
    %824 = vmatprep.mubr.bf16.mxu0 0
    %825 = vmatmul.mubr.bf16.gmra.mrb[0].mxu0 %v663
    %v826 = vpop.f32.mrb[0].mxu0
    %v827 = vadd.f32 %v226, %v826
    %v828 = vpop.f32.mrb[0].mxu0
    %v829 = vpop.f32.mrb[0].mxu0
    %v830 = vadd.f32 %v231, %v829
    %v831 = vpop.f32.mrb[0].mxu0
    %832 = vmatprep.mubr.bf16.mxu0 0
    %833 = vmatmul.mubr.bf16.gmra.mrb[0].mxu0 %v666
    %v834 = vpop.f32.mrb[0].mxu0
    %v835 = vadd.f32 %v236, %v834
    %v836 = vpop.f32.mrb[0].mxu0
    %v837 = vpop.f32.mrb[0].mxu0
    %v838 = vadd.f32 %v241, %v837
    %v839 = vpop.f32.mrb[0].mxu0
    %840 = vmatprep.mubr.bf16.mxu0 0
    %841 = vmatmul.mubr.bf16.gmra.mrb[0].mxu0 %v669
    %v842 = vpop.f32.mrb[0].mxu0
    %v843 = vadd.f32 %v246, %v842
    %v844 = vpop.f32.mrb[0].mxu0
    %v845 = vpop.f32.mrb[0].mxu0
    %v846 = vadd.f32 %v251, %v845
    %v847 = vpop.f32.mrb[0].mxu0
    %848 = vmatprep.mubr.bf16.mxu0 0
    %849 = vmatmul.mubr.bf16.gmra.mrb[0].mxu0 %v672
    %v850 = vpop.f32.mrb[0].mxu0
    %v851 = vadd.f32 %v256, %v850
    %v852 = vpop.f32.mrb[0].mxu0
    %v853 = vpop.f32.mrb[0].mxu0
    %v854 = vadd.f32 %v261, %v853
    %v855 = vpop.f32.mrb[0].mxu0
    %856 = vmatprep.mubr.bf16.mxu0 0
    %857 = vmatmul.mubr.bf16.gmra.mrb[0].mxu0 %v675
    %v858 = vpop.f32.mrb[0].mxu0
    %v859 = vadd.f32 %v266, %v858
    %v860 = vpop.f32.mrb[0].mxu0
    %v861 = vpop.f32.mrb[0].mxu0
    %v862 = vadd.f32 %v271, %v861
    %v863 = vpop.f32.mrb[0].mxu0
    %864 = vmatprep.mubr.bf16.mxu0 0
    %865 = vmatmul.mubr.bf16.gmra.mrb[0].mxu0 %v678
    %v866 = vpop.f32.mrb[0].mxu0
    %v867 = vadd.f32 %v276, %v866
    %v868 = vpop.f32.mrb[0].mxu0
    %v869 = vpop.f32.mrb[0].mxu0
    %v870 = vadd.f32 %v281, %v869
    %v871 = vpop.f32.mrb[0].mxu0
    %872 = vmatprep.mubr.bf16.mxu0 0
    %873 = vmatmul.mubr.bf16.gmra.mrb[0].mxu0 %v681
    %v874 = vpop.f32.mrb[0].mxu0
    %v875 = vadd.f32 %v286, %v874
    %v876 = vpop.f32.mrb[0].mxu0
    %v877 = vpop.f32.mrb[0].mxu0
    %v878 = vadd.f32 %v291, %v877
    %v879 = vpop.f32.mrb[0].mxu0
    %880 = vmatprep.mubr.bf16.mxu0 0
    %881 = vmatmul.mubr.bf16.gmra.mrb[0].mxu0 %v684
    %v882 = vpop.f32.mrb[0].mxu0
    %v883 = vadd.f32 %v296, %v882
    %v884 = vpop.f32.mrb[0].mxu0
    %v885 = vpop.f32.mrb[0].mxu0
    %v886 = vadd.f32 %v301, %v885
    %v887 = vpop.f32.mrb[0].mxu0
    %888 = vmatprep.mubr.bf16.mxu0 0
    %889 = vmatmul.mubr.bf16.gmra.mrb[0].mxu0 %v687
    %v890 = vpop.f32.mrb[0].mxu0
    %v891 = vadd.f32 %v306, %v890
    %v892 = vpop.f32.mrb[0].mxu0
    %v893 = vpop.f32.mrb[0].mxu0
    %v894 = vadd.f32 %v311, %v893
    %v895 = vpop.f32.mrb[0].mxu0
    %896 = vmatprep.mubr.bf16.mxu0 0
    %897 = vmatmul.mubr.bf16.gmra.mrb[0].mxu0 %v690
    %v898 = vpop.f32.mrb[0].mxu0
    %v899 = vadd.f32 %v316, %v898
    %v900 = vpop.f32.mrb[0].mxu0
    %v901 = vpop.f32.mrb[0].mxu0
    %v902 = vadd.f32 %v321, %v901
    %v903 = vpop.f32.mrb[0].mxu0
    %904 = vmatprep.mubr.bf16.mxu0 0
    %905 = vmatmul.mubr.bf16.gmra.mrb[0].mxu0 %v693
    %v906 = vpop.f32.mrb[0].mxu0
    %v907 = vadd.f32 %v326, %v906
    %v908 = vpop.f32.mrb[0].mxu0
    %v909 = vpop.f32.mrb[0].mxu0
    %v910 = vadd.f32 %v331, %v909
    %v911 = vpop.f32.mrb[0].mxu0
    %912 = vmatprep.mubr.bf16.mxu0 0
    %913 = vmatmul.mubr.bf16.gmra.mrb[0].mxu0 %v696
    %v914 = vpop.f32.mrb[0].mxu0
    %v915 = vadd.f32 %v336, %v914
    %v916 = vpop.f32.mrb[0].mxu0
    %v917 = vpop.f32.mrb[0].mxu0
    %v918 = vadd.f32 %v341, %v917
    %v919 = vpop.f32.mrb[0].mxu0
    %920 = vmatprep.mubr.bf16.mxu0 0
    %921 = vmatmul.mubr.bf16.gmra.mrb[0].mxu0 %v699
    %v922 = vpop.f32.mrb[0].mxu0
    %v923 = vadd.f32 %v346, %v922
    %v924 = vpop.f32.mrb[0].mxu0
    %v925 = vpop.f32.mrb[0].mxu0
    %v926 = vadd.f32 %v351, %v925
    %v927 = vpop.f32.mrb[0].mxu0
    %928 = vmatprep.mubr.bf16.mxu0 0
    %929 = vmatmul.mubr.bf16.gmra.mrb[0].mxu0 %v702
    %v930 = vpop.f32.mrb[0].mxu0
    %v931 = vadd.f32 %v356, %v930
    %v932 = vpop.f32.mrb[0].mxu0
    %v933 = vpop.f32.mrb[0].mxu0
    %v934 = vadd.f32 %v361, %v933
    %v935 = vpop.f32.mrb[0].mxu0
    %936 = vmatprep.mubr.bf16.mxu0 0
    %937 = vmatmul.mubr.bf16.gmra.mrb[0].mxu0 %v705
    %v938 = vpop.f32.mrb[0].mxu0
    %v939 = vadd.f32 %v366, %v938
    %v940 = vpop.f32.mrb[0].mxu0
    %v941 = vpop.f32.mrb[0].mxu0
    %v942 = vadd.f32 %v371, %v941
    %v943 = vpop.f32.mrb[0].mxu0
    %944 = vmatprep.mubr.bf16.mxu0 0
    %945 = vmatmul.mubr.bf16.gmra.mrb[0].mxu0 %v708
    %v946 = vpop.f32.mrb[0].mxu0
    %v947 = vadd.f32 %v376, %v946
    %v948 = vpop.f32.mrb[0].mxu0
    %v949 = vpop.f32.mrb[0].mxu0
    %v950 = vadd.f32 %v381, %v949
    %v951 = vpop.f32.mrb[0].mxu0
    %952 = vmatprep.mubr.bf16.mxu0 0
    %953 = vmatmul.mubr.bf16.gmra.mrb[0].mxu0 %v711
    %v954 = vpop.f32.mrb[0].mxu0
    %v955 = vadd.f32 %v386, %v954
    %v956 = vpop.f32.mrb[0].mxu0
    %v957 = vpop.f32.mrb[0].mxu0
    %v958 = vadd.f32 %v391, %v957
    %v959 = vpop.f32.mrb[0].mxu0
    %960 = vmatprep.mubr.bf16.mxu0 0
    %961 = vmatmul.mubr.bf16.gmra.mrb[0].mxu0 %v714
    %v962 = vpop.f32.mrb[0].mxu0
    %v963 = vadd.f32 %v396, %v962
    %v964 = vpop.f32.mrb[0].mxu0
    %v965 = vpop.f32.mrb[0].mxu0
    %v966 = vadd.f32 %v401, %v965
    %v967 = vpop.f32.mrb[0].mxu0
    %968 = vmatprep.mubr.bf16.mxu0 0
    %969 = vmatmul.mubr.bf16.gmra.mrb[0].mxu0 %v717
    %v970 = vpop.f32.mrb[0].mxu0
    %v971 = vadd.f32 %v406, %v970
    %v972 = vpop.f32.mrb[0].mxu0
    %v973 = vpop.f32.mrb[0].mxu0
    %v974 = vadd.f32 %v411, %v973
    %v975 = vpop.f32.mrb[0].mxu0
    %976 = vmatprep.mubr.bf16.mxu0 0
    %977 = vmatmul.mubr.bf16.gmra.mrb[0].mxu0 %v720
    %v978 = vpop.f32.mrb[0].mxu0
    %v979 = vadd.f32 %v416, %v978
    %v980 = vpop.f32.mrb[0].mxu0
    %v981 = vpop.f32.mrb[0].mxu0
    %v982 = vadd.f32 %v421, %v981
    %v983 = vpop.f32.mrb[0].mxu0
    %984 = vmatprep.mubr.bf16.mxu0 0
    %985 = vmatmul.mubr.bf16.gmra.mrb[0].mxu0 %v723
    %v986 = vpop.f32.mrb[0].mxu0
    %v987 = vadd.f32 %v426, %v986
    %v988 = vpop.f32.mrb[0].mxu0
    %v989 = vpop.f32.mrb[0].mxu0
    %v990 = vadd.f32 %v431, %v989
    %v991 = vpop.f32.mrb[0].mxu0
    %992 = vmatprep.mubr.bf16.mxu0 0
    %993 = vmatmul.mubr.bf16.gmra.mrb[0].mxu0 %v726
    %v994 = vpop.f32.mrb[0].mxu0
    %v995 = vadd.f32 %v436, %v994
    %v996 = vpop.f32.mrb[0].mxu0
    %v997 = vpop.f32.mrb[0].mxu0
    %v998 = vadd.f32 %v441, %v997
    %v999 = vpop.f32.mrb[0].mxu0
    %1000 = vmatprep.mubr.bf16.mxu0 0
    %1001 = vmatmul.mubr.bf16.gmra.mrb[0].mxu0 %v729
    %v1002 = vpop.f32.mrb[0].mxu0
    %v1003 = vadd.f32 %v446, %v1002
    %v1004 = vpop.f32.mrb[0].mxu0
    %v1005 = vpop.f32.mrb[0].mxu0
    %v1006 = vadd.f32 %v451, %v1005
    %v1007 = vpop.f32.mrb[0].mxu0
    %1008 = vmatprep.mubr.bf16.mxu0 0
    %1009 = vmatmul.mubr.bf16.gmra.mrb[0].mxu0 %v732
    %v1010 = vpop.f32.mrb[0].mxu0
    %v1011 = vadd.f32 %v456, %v1010
    %v1012 = vpop.f32.mrb[0].mxu0
    %v1013 = vpop.f32.mrb[0].mxu0
    %v1014 = vadd.f32 %v461, %v1013
    %v1015 = vpop.f32.mrb[0].mxu0
    %1016 = vmatprep.mubr.bf16.mxu0 0
    %1017 = vmatmul.mubr.bf16.gmra.mrb[0].mxu0 %v735
    %v1018 = vpop.f32.mrb[0].mxu0
    %v1019 = vadd.f32 %v466, %v1018
    %v1020 = vpop.f32.mrb[0].mxu0
    %v1021 = vpop.f32.mrb[0].mxu0
    %v1022 = vadd.f32 %v471, %v1021
    %v1023 = vpop.f32.mrb[0].mxu0
    %1024 = vmatprep.mubr.bf16.mxu0 0
    %1025 = vmatmul.mubr.bf16.gmra.mrb[0].mxu0 %v738
    %v1026 = vpop.f32.mrb[0].mxu0
    %v1027 = vadd.f32 %v476, %v1026
    %v1028 = vpop.f32.mrb[0].mxu0
    %v1029 = vpop.f32.mrb[0].mxu0
    %v1030 = vadd.f32 %v481, %v1029
    %v1031 = vpop.f32.mrb[0].mxu0
    %1032 = vdwg.mxu0
    %v1033 = vmax.f32 %v779, 0.0
    %v1034 = vmax.f32 %v782, 0.0
    %v1035 = vmax.f32 %v787, 0.0
    %v1036 = vmax.f32 %v790, 0.0
    %v1037 = vmax.f32 %v795, 0.0
    %v1038 = vmax.f32 %v798, 0.0
    %v1039 = vmax.f32 %v803, 0.0
    %v1040 = vmax.f32 %v806, 0.0
    %v1041 = vmax.f32 %v811, 0.0
    %v1042 = vmax.f32 %v814, 0.0
    %v1043 = vmax.f32 %v819, 0.0
    %v1044 = vmax.f32 %v822, 0.0
    %v1045 = vmax.f32 %v827, 0.0
    %v1046 = vmax.f32 %v830, 0.0
    %v1047 = vmax.f32 %v835, 0.0
    %v1048 = vmax.f32 %v838, 0.0
    %v1049 = vmax.f32 %v843, 0.0
    %v1050 = vmax.f32 %v846, 0.0
    %v1051 = vmax.f32 %v851, 0.0
    %v1052 = vmax.f32 %v854, 0.0
    %v1053 = vmax.f32 %v859, 0.0
    %v1054 = vmax.f32 %v862, 0.0
    %v1055 = vmax.f32 %v867, 0.0
    %v1056 = vmax.f32 %v870, 0.0
    %v1057 = vmax.f32 %v875, 0.0
    %v1058 = vmax.f32 %v878, 0.0
    %v1059 = vmax.f32 %v883, 0.0
    %v1060 = vmax.f32 %v886, 0.0
    %v1061 = vmax.f32 %v891, 0.0
    %v1062 = vmax.f32 %v894, 0.0
    %v1063 = vmax.f32 %v899, 0.0
    %v1064 = vmax.f32 %v902, 0.0
    %v1065 = vmax.f32 %v907, 0.0
    %v1066 = vmax.f32 %v910, 0.0
    %v1067 = vmax.f32 %v915, 0.0
    %v1068 = vmax.f32 %v918, 0.0
    %v1069 = vmax.f32 %v923, 0.0
    %v1070 = vmax.f32 %v926, 0.0
    %v1071 = vmax.f32 %v931, 0.0
    %v1072 = vmax.f32 %v934, 0.0
    %v1073 = vmax.f32 %v939, 0.0
    %v1074 = vmax.f32 %v942, 0.0
    %v1075 = vmax.f32 %v947, 0.0
    %v1076 = vmax.f32 %v950, 0.0
    %v1077 = vmax.f32 %v955, 0.0
    %v1078 = vmax.f32 %v958, 0.0
    %v1079 = vmax.f32 %v963, 0.0
    %v1080 = vmax.f32 %v966, 0.0
    %v1081 = vmax.f32 %v971, 0.0
    %v1082 = vmax.f32 %v974, 0.0
    %v1083 = vmax.f32 %v979, 0.0
    %v1084 = vmax.f32 %v982, 0.0
    %v1085 = vmax.f32 %v987, 0.0
    %v1086 = vmax.f32 %v990, 0.0
    %v1087 = vmax.f32 %v995, 0.0
    %v1088 = vmax.f32 %v998, 0.0
    %v1089 = vmax.f32 %v1003, 0.0
    %v1090 = vmax.f32 %v1006, 0.0
    %v1091 = vmax.f32 %v1011, 0.0
    %v1092 = vmax.f32 %v1014, 0.0
    %v1093 = vmax.f32 %v1019, 0.0
    %v1094 = vmax.f32 %v1022, 0.0
    %v1095 = vmax.f32 %v1027, 0.0
    %v1096 = vmax.f32 %v1030, 0.0
    %v1097 = vld [vmem:[%s3] sm:$0xff]
    %v1098 = vld [vmem:[%s3 + $0x8] sm:$0xff]
    %v1099 = vld [vmem:[%s3 + $0x10] sm:$0xff]
    %v1100 = vld [vmem:[%s3 + $0x18] sm:$0xff]
    %v1101 = vld [vmem:[%s3 + $0x20] sm:$0xff]
    %v1102 = vld [vmem:[%s3 + $0x28] sm:$0xff]
    %v1103 = vld [vmem:[%s3 + $0x30] sm:$0xff]
    %v1104 = vld [vmem:[%s3 + $0x38] sm:$0xff]
    %v1105 = vld [vmem:[%s3 + $0x40] sm:$0xff]
    %v1106 = vld [vmem:[%s3 + $0x48] sm:$0xff]
    %v1107 = vld [vmem:[%s3 + $0x50] sm:$0xff]
    %v1108 = vld [vmem:[%s3 + $0x58] sm:$0xff]
    %v1109 = vld [vmem:[%s3 + $0x60] sm:$0xff]
    %v1110 = vld [vmem:[%s3 + $0x68] sm:$0xff]
    %v1111 = vld [vmem:[%s3 + $0x70] sm:$0xff]
    %v1112 = vld [vmem:[%s3 + $0x78] sm:$0xff]
    %v1113 = vld [vmem:[%s3 + $0x80] sm:$0xff]
    %v1114 = vld [vmem:[%s3 + $0x88] sm:$0xff]
    %v1115 = vld [vmem:[%s3 + $0x90] sm:$0xff]
    %v1116 = vld [vmem:[%s3 + $0x98] sm:$0xff]
    %v1117 = vld [vmem:[%s3 + $0xa0] sm:$0xff]
    %v1118 = vld [vmem:[%s3 + $0xa8] sm:$0xff]
    %v1119 = vld [vmem:[%s3 + $0xb0] sm:$0xff]
    %v1120 = vld [vmem:[%s3 + $0xb8] sm:$0xff]
    %v1121 = vld [vmem:[%s3 + $0xc0] sm:$0xff]
    %v1122 = vld [vmem:[%s3 + $0xc8] sm:$0xff]
    %v1123 = vld [vmem:[%s3 + $0xd0] sm:$0xff]
    %v1124 = vld [vmem:[%s3 + $0xd8] sm:$0xff]
    %v1125 = vld [vmem:[%s3 + $0xe0] sm:$0xff]
    %v1126 = vld [vmem:[%s3 + $0xe8] sm:$0xff]
    %v1127 = vld [vmem:[%s3 + $0xf0] sm:$0xff]
    %v1128 = vld [vmem:[%s3 + $0xf8] sm:$0xff]
    %v1129 = vld [vmem:[%s3 + $0x100] sm:$0xff]
    %v1130 = vld [vmem:[%s3 + $0x108] sm:$0xff]
    %v1131 = vld [vmem:[%s3 + $0x110] sm:$0xff]
    %v1132 = vld [vmem:[%s3 + $0x118] sm:$0xff]
    %v1133 = vld [vmem:[%s3 + $0x120] sm:$0xff]
    %v1134 = vld [vmem:[%s3 + $0x128] sm:$0xff]
    %v1135 = vld [vmem:[%s3 + $0x130] sm:$0xff]
    %v1136 = vld [vmem:[%s3 + $0x138] sm:$0xff]
    %v1137 = vld [vmem:[%s3 + $0x140] sm:$0xff]
    %v1138 = vld [vmem:[%s3 + $0x148] sm:$0xff]
    %v1139 = vld [vmem:[%s3 + $0x150] sm:$0xff]
    %v1140 = vld [vmem:[%s3 + $0x158] sm:$0xff]
    %v1141 = vld [vmem:[%s3 + $0x160] sm:$0xff]
    %v1142 = vld [vmem:[%s3 + $0x168] sm:$0xff]
    %v1143 = vld [vmem:[%s3 + $0x170] sm:$0xff]
    %v1144 = vld [vmem:[%s3 + $0x178] sm:$0xff]
    %v1145 = vld [vmem:[%s3 + $0x180] sm:$0xff]
    %v1146 = vld [vmem:[%s3 + $0x188] sm:$0xff]
    %v1147 = vld [vmem:[%s3 + $0x190] sm:$0xff]
    %v1148 = vld [vmem:[%s3 + $0x198] sm:$0xff]
    %v1149 = vld [vmem:[%s3 + $0x1a0] sm:$0xff]
    %v1150 = vld [vmem:[%s3 + $0x1a8] sm:$0xff]
    %v1151 = vld [vmem:[%s3 + $0x1b0] sm:$0xff]
    %v1152 = vld [vmem:[%s3 + $0x1b8] sm:$0xff]
    %v1153 = vld [vmem:[%s3 + $0x1c0] sm:$0xff]
    %v1154 = vld [vmem:[%s3 + $0x1c8] sm:$0xff]
    %v1155 = vld [vmem:[%s3 + $0x1d0] sm:$0xff]
    %v1156 = vld [vmem:[%s3 + $0x1d8] sm:$0xff]
    %v1157 = vld [vmem:[%s3 + $0x1e0] sm:$0xff]
    %v1158 = vld [vmem:[%s3 + $0x1e8] sm:$0xff]
    %v1159 = vld [vmem:[%s3 + $0x1f0] sm:$0xff]
    %v1160 = vld [vmem:[%s3 + $0x1f8] sm:$0xff]
    %v1161 = vld [vmem:[%s3 + $0x200] sm:$0xff]
    %v1162 = vld [vmem:[%s3 + $0x208] sm:$0xff]
    %v1163 = vld [vmem:[%s3 + $0x210] sm:$0xff]
    %v1164 = vld [vmem:[%s3 + $0x218] sm:$0xff]
    %v1165 = vld [vmem:[%s3 + $0x220] sm:$0xff]
    %v1166 = vld [vmem:[%s3 + $0x228] sm:$0xff]
    %v1167 = vld [vmem:[%s3 + $0x230] sm:$0xff]
    %v1168 = vld [vmem:[%s3 + $0x238] sm:$0xff]
    %v1169 = vld [vmem:[%s3 + $0x240] sm:$0xff]
    %v1170 = vld [vmem:[%s3 + $0x248] sm:$0xff]
    %v1171 = vld [vmem:[%s3 + $0x250] sm:$0xff]
    %v1172 = vld [vmem:[%s3 + $0x258] sm:$0xff]
    %v1173 = vld [vmem:[%s3 + $0x260] sm:$0xff]
    %v1174 = vld [vmem:[%s3 + $0x268] sm:$0xff]
    %v1175 = vld [vmem:[%s3 + $0x270] sm:$0xff]
    %v1176 = vld [vmem:[%s3 + $0x278] sm:$0xff]
    %v1177 = vld [vmem:[%s3 + $0x280] sm:$0xff]
    %v1178 = vld [vmem:[%s3 + $0x288] sm:$0xff]
    %v1179 = vld [vmem:[%s3 + $0x290] sm:$0xff]
    %v1180 = vld [vmem:[%s3 + $0x298] sm:$0xff]
    %v1181 = vld [vmem:[%s3 + $0x2a0] sm:$0xff]
    %v1182 = vld [vmem:[%s3 + $0x2a8] sm:$0xff]
    %v1183 = vld [vmem:[%s3 + $0x2b0] sm:$0xff]
    %v1184 = vld [vmem:[%s3 + $0x2b8] sm:$0xff]
    %v1185 = vld [vmem:[%s3 + $0x2c0] sm:$0xff]
    %v1186 = vld [vmem:[%s3 + $0x2c8] sm:$0xff]
    %v1187 = vld [vmem:[%s3 + $0x2d0] sm:$0xff]
    %v1188 = vld [vmem:[%s3 + $0x2d8] sm:$0xff]
    %v1189 = vld [vmem:[%s3 + $0x2e0] sm:$0xff]
    %v1190 = vld [vmem:[%s3 + $0x2e8] sm:$0xff]
    %v1191 = vld [vmem:[%s3 + $0x2f0] sm:$0xff]
    %v1192 = vld [vmem:[%s3 + $0x2f8] sm:$0xff]
    %v1193 = vpack.c.bf16 %v1034, %v1033
    %v1194 = vpack.c.bf16 %v1036, %v1035
    %v1195 = vpack.c.bf16 %v1038, %v1037
    %v1196 = vpack.c.bf16 %v1040, %v1039
    %v1197 = vpack.c.bf16 %v1042, %v1041
    %v1198 = vpack.c.bf16 %v1044, %v1043
    %v1199 = vpack.c.bf16 %v1046, %v1045
    %v1200 = vpack.c.bf16 %v1048, %v1047
    %v1201 = vpack.c.bf16 %v1050, %v1049
    %v1202 = vpack.c.bf16 %v1052, %v1051
    %v1203 = vpack.c.bf16 %v1054, %v1053
    %v1204 = vpack.c.bf16 %v1056, %v1055
    %v1205 = vpack.c.bf16 %v1058, %v1057
    %v1206 = vpack.c.bf16 %v1060, %v1059
    %v1207 = vpack.c.bf16 %v1062, %v1061
    %v1208 = vpack.c.bf16 %v1064, %v1063
    %v1209 = vpack.c.bf16 %v1066, %v1065
    %v1210 = vpack.c.bf16 %v1068, %v1067
    %v1211 = vpack.c.bf16 %v1070, %v1069
    %v1212 = vpack.c.bf16 %v1072, %v1071
    %v1213 = vpack.c.bf16 %v1074, %v1073
    %v1214 = vpack.c.bf16 %v1076, %v1075
    %v1215 = vpack.c.bf16 %v1078, %v1077
    %v1216 = vpack.c.bf16 %v1080, %v1079
    %v1217 = vpack.c.bf16 %v1082, %v1081
    %v1218 = vpack.c.bf16 %v1084, %v1083
    %v1219 = vpack.c.bf16 %v1086, %v1085
    %v1220 = vpack.c.bf16 %v1088, %v1087
    %v1221 = vpack.c.bf16 %v1090, %v1089
    %v1222 = vpack.c.bf16 %v1092, %v1091
    %v1223 = vpack.c.bf16 %v1094, %v1093
    %v1224 = vpack.c.bf16 %v1096, %v1095
    %v1225 = vld [vmem:[%s4] sm:$0xff]
    %v1226 = vld [vmem:[%s4 + $0x8] sm:$0xff]
    %v1227 = vld [vmem:[%s4 + $0x10] sm:$0xff]
    %v1228 = vld [vmem:[%s4 + $0x18] sm:$0xff]
    %v1229 = vld [vmem:[%s4 + $0x20] sm:$0xff]
    %v1230 = vld [vmem:[%s4 + $0x28] sm:$0xff]
    %v1231 = vld [vmem:[%s4 + $0x30] sm:$0xff]
    %v1232 = vld [vmem:[%s4 + $0x38] sm:$0xff]
    %v1233 = vld [vmem:[%s4 + $0x40] sm:$0xff]
    %v1234 = vld [vmem:[%s4 + $0x48] sm:$0xff]
    %v1235 = vld [vmem:[%s4 + $0x50] sm:$0xff]
    %v1236 = vld [vmem:[%s4 + $0x58] sm:$0xff]
    %v1237 = vld [vmem:[%s4 + $0x60] sm:$0xff]
    %v1238 = vld [vmem:[%s4 + $0x68] sm:$0xff]
    %v1239 = vld [vmem:[%s4 + $0x70] sm:$0xff]
    %v1240 = vld [vmem:[%s4 + $0x78] sm:$0xff]
    %v1241 = vld [vmem:[%s4 + $0x80] sm:$0xff]
    %v1242 = vld [vmem:[%s4 + $0x88] sm:$0xff]
    %v1243 = vld [vmem:[%s4 + $0x90] sm:$0xff]
    %v1244 = vld [vmem:[%s4 + $0x98] sm:$0xff]
    %v1245 = vld [vmem:[%s4 + $0xa0] sm:$0xff]
    %v1246 = vld [vmem:[%s4 + $0xa8] sm:$0xff]
    %v1247 = vld [vmem:[%s4 + $0xb0] sm:$0xff]
    %v1248 = vld [vmem:[%s4 + $0xb8] sm:$0xff]
    %v1249 = vld [vmem:[%s4 + $0xc0] sm:$0xff]
    %v1250 = vld [vmem:[%s4 + $0xc8] sm:$0xff]
    %v1251 = vld [vmem:[%s4 + $0xd0] sm:$0xff]
    %v1252 = vld [vmem:[%s4 + $0xd8] sm:$0xff]
    %v1253 = vld [vmem:[%s4 + $0xe0] sm:$0xff]
    %v1254 = vld [vmem:[%s4 + $0xe8] sm:$0xff]
    %v1255 = vld [vmem:[%s4 + $0xf0] sm:$0xff]
    %v1256 = vld [vmem:[%s4 + $0xf8] sm:$0xff]
    %v1257 = vld [vmem:[%s4 + $0x100] sm:$0xff]
    %v1258 = vld [vmem:[%s4 + $0x108] sm:$0xff]
    %v1259 = vld [vmem:[%s4 + $0x110] sm:$0xff]
    %v1260 = vld [vmem:[%s4 + $0x118] sm:$0xff]
    %v1261 = vld [vmem:[%s4 + $0x120] sm:$0xff]
    %v1262 = vld [vmem:[%s4 + $0x128] sm:$0xff]
    %v1263 = vld [vmem:[%s4 + $0x130] sm:$0xff]
    %v1264 = vld [vmem:[%s4 + $0x138] sm:$0xff]
    %v1265 = vld [vmem:[%s4 + $0x140] sm:$0xff]
    %v1266 = vld [vmem:[%s4 + $0x148] sm:$0xff]
    %v1267 = vld [vmem:[%s4 + $0x150] sm:$0xff]
    %v1268 = vld [vmem:[%s4 + $0x158] sm:$0xff]
    %v1269 = vld [vmem:[%s4 + $0x160] sm:$0xff]
    %v1270 = vld [vmem:[%s4 + $0x168] sm:$0xff]
    %v1271 = vld [vmem:[%s4 + $0x170] sm:$0xff]
    %v1272 = vld [vmem:[%s4 + $0x178] sm:$0xff]
    %1274 = vset.pattern.permute.xlu0 0
    %1275 = vperm.xlu0 %1274, %v1225
    %v1276 = vpop.permute.xlu0 %1275
    %1279 = vset.pattern.permute.xlu0 0
    %1280 = vperm.xlu0 %1279, %v1226
    %v1281 = vpop.permute.xlu0 %1280
    %1284 = vset.pattern.permute.xlu0 0
    %1285 = vperm.xlu0 %1284, %v1227
    %v1286 = vpop.permute.xlu0 %1285
    %1289 = vset.pattern.permute.xlu0 0
    %1290 = vperm.xlu0 %1289, %v1228
    %v1291 = vpop.permute.xlu0 %1290
    %1294 = vset.pattern.permute.xlu0 0
    %1295 = vperm.xlu0 %1294, %v1229
    %v1296 = vpop.permute.xlu0 %1295
    %1299 = vset.pattern.permute.xlu0 0
    %1300 = vperm.xlu0 %1299, %v1230
    %v1301 = vpop.permute.xlu0 %1300
    %1304 = vset.pattern.permute.xlu0 0
    %1305 = vperm.xlu0 %1304, %v1231
    %v1306 = vpop.permute.xlu0 %1305
    %1309 = vset.pattern.permute.xlu0 0
    %1310 = vperm.xlu0 %1309, %v1232
    %v1311 = vpop.permute.xlu0 %1310
    %1314 = vset.pattern.permute.xlu0 0
    %1315 = vperm.xlu0 %1314, %v1233
    %v1316 = vpop.permute.xlu0 %1315
    %1319 = vset.pattern.permute.xlu0 0
    %1320 = vperm.xlu0 %1319, %v1234
    %v1321 = vpop.permute.xlu0 %1320
    %1324 = vset.pattern.permute.xlu0 0
    %1325 = vperm.xlu0 %1324, %v1235
    %v1326 = vpop.permute.xlu0 %1325
    %1329 = vset.pattern.permute.xlu0 0
    %1330 = vperm.xlu0 %1329, %v1236
    %v1331 = vpop.permute.xlu0 %1330
    %1334 = vset.pattern.permute.xlu0 0
    %1335 = vperm.xlu0 %1334, %v1237
    %v1336 = vpop.permute.xlu0 %1335
    %1339 = vset.pattern.permute.xlu0 0
    %1340 = vperm.xlu0 %1339, %v1238
    %v1341 = vpop.permute.xlu0 %1340
    %1344 = vset.pattern.permute.xlu0 0
    %1345 = vperm.xlu0 %1344, %v1239
    %v1346 = vpop.permute.xlu0 %1345
    %1349 = vset.pattern.permute.xlu0 0
    %1350 = vperm.xlu0 %1349, %v1240
    %v1351 = vpop.permute.xlu0 %1350
    %1354 = vset.pattern.permute.xlu0 0
    %1355 = vperm.xlu0 %1354, %v1241
    %v1356 = vpop.permute.xlu0 %1355
    %1359 = vset.pattern.permute.xlu0 0
    %1360 = vperm.xlu0 %1359, %v1242
    %v1361 = vpop.permute.xlu0 %1360
    %1364 = vset.pattern.permute.xlu0 0
    %1365 = vperm.xlu0 %1364, %v1243
    %v1366 = vpop.permute.xlu0 %1365
    %1369 = vset.pattern.permute.xlu0 0
    %1370 = vperm.xlu0 %1369, %v1244
    %v1371 = vpop.permute.xlu0 %1370
    %1374 = vset.pattern.permute.xlu0 0
    %1375 = vperm.xlu0 %1374, %v1245
    %v1376 = vpop.permute.xlu0 %1375
    %1379 = vset.pattern.permute.xlu0 0
    %1380 = vperm.xlu0 %1379, %v1246
    %v1381 = vpop.permute.xlu0 %1380
    %1384 = vset.pattern.permute.xlu0 0
    %1385 = vperm.xlu0 %1384, %v1247
    %v1386 = vpop.permute.xlu0 %1385
    %1389 = vset.pattern.permute.xlu0 0
    %1390 = vperm.xlu0 %1389, %v1248
    %v1391 = vpop.permute.xlu0 %1390
    %1394 = vset.pattern.permute.xlu0 0
    %1395 = vperm.xlu0 %1394, %v1249
    %v1396 = vpop.permute.xlu0 %1395
    %1399 = vset.pattern.permute.xlu0 0
    %1400 = vperm.xlu0 %1399, %v1250
    %v1401 = vpop.permute.xlu0 %1400
    %1404 = vset.pattern.permute.xlu0 0
    %1405 = vperm.xlu0 %1404, %v1251
    %v1406 = vpop.permute.xlu0 %1405
    %1409 = vset.pattern.permute.xlu0 0
    %1410 = vperm.xlu0 %1409, %v1252
    %v1411 = vpop.permute.xlu0 %1410
    %1414 = vset.pattern.permute.xlu0 0
    %1415 = vperm.xlu0 %1414, %v1253
    %v1416 = vpop.permute.xlu0 %1415
    %1419 = vset.pattern.permute.xlu0 0
    %1420 = vperm.xlu0 %1419, %v1254
    %v1421 = vpop.permute.xlu0 %1420
    %1424 = vset.pattern.permute.xlu0 0
    %1425 = vperm.xlu0 %1424, %v1255
    %v1426 = vpop.permute.xlu0 %1425
    %1429 = vset.pattern.permute.xlu0 0
    %1430 = vperm.xlu0 %1429, %v1256
    %v1431 = vpop.permute.xlu0 %1430
    %1434 = vset.pattern.permute.xlu0 0
    %1435 = vperm.xlu0 %1434, %v1257
    %v1436 = vpop.permute.xlu0 %1435
    %1439 = vset.pattern.permute.xlu0 0
    %1440 = vperm.xlu0 %1439, %v1258
    %v1441 = vpop.permute.xlu0 %1440
    %1444 = vset.pattern.permute.xlu0 0
    %1445 = vperm.xlu0 %1444, %v1259
    %v1446 = vpop.permute.xlu0 %1445
    %1449 = vset.pattern.permute.xlu0 0
    %1450 = vperm.xlu0 %1449, %v1260
    %v1451 = vpop.permute.xlu0 %1450
    %1454 = vset.pattern.permute.xlu0 0
    %1455 = vperm.xlu0 %1454, %v1261
    %v1456 = vpop.permute.xlu0 %1455
    %1459 = vset.pattern.permute.xlu0 0
    %1460 = vperm.xlu0 %1459, %v1262
    %v1461 = vpop.permute.xlu0 %1460
    %1464 = vset.pattern.permute.xlu0 0
    %1465 = vperm.xlu0 %1464, %v1263
    %v1466 = vpop.permute.xlu0 %1465
    %1469 = vset.pattern.permute.xlu0 0
    %1470 = vperm.xlu0 %1469, %v1264
    %v1471 = vpop.permute.xlu0 %1470
    %1474 = vset.pattern.permute.xlu0 0
    %1475 = vperm.xlu0 %1474, %v1265
    %v1476 = vpop.permute.xlu0 %1475
    %1479 = vset.pattern.permute.xlu0 0
    %1480 = vperm.xlu0 %1479, %v1266
    %v1481 = vpop.permute.xlu0 %1480
    %1484 = vset.pattern.permute.xlu0 0
    %1485 = vperm.xlu0 %1484, %v1267
    %v1486 = vpop.permute.xlu0 %1485
    %1489 = vset.pattern.permute.xlu0 0
    %1490 = vperm.xlu0 %1489, %v1268
    %v1491 = vpop.permute.xlu0 %1490
    %1494 = vset.pattern.permute.xlu0 0
    %1495 = vperm.xlu0 %1494, %v1269
    %v1496 = vpop.permute.xlu0 %1495
    %1499 = vset.pattern.permute.xlu0 0
    %1500 = vperm.xlu0 %1499, %v1270
    %v1501 = vpop.permute.xlu0 %1500
    %1504 = vset.pattern.permute.xlu0 0
    %1505 = vperm.xlu0 %1504, %v1271
    %v1506 = vpop.permute.xlu0 %1505
    %1509 = vset.pattern.permute.xlu0 0
    %1510 = vperm.xlu0 %1509, %v1272
    %v1511 = vpop.permute.xlu0 %1510
    %v1609 = vunpack.c.l.b16 %v1097
    %v1610 = vunpack.c.h.b16 %v1097
    %v1611 = vunpack.c.l.b16 %v1098
    %v1612 = vunpack.c.h.b16 %v1098
    %v1613 = vunpack.c.l.b16 %v1099
    %v1614 = vunpack.c.h.b16 %v1099
    %v1615 = vunpack.c.l.b16 %v1100
    %v1616 = vunpack.c.h.b16 %v1100
    %v1617 = vunpack.c.l.b16 %v1101
    %v1618 = vunpack.c.h.b16 %v1101
    %v1619 = vunpack.c.l.b16 %v1102
    %v1620 = vunpack.c.h.b16 %v1102
    %v1621 = vunpack.c.l.b16 %v1103
    %v1622 = vunpack.c.h.b16 %v1103
    %v1623 = vunpack.c.l.b16 %v1104
    %v1624 = vunpack.c.h.b16 %v1104
    %v1625 = vunpack.c.l.b16 %v1105
    %v1626 = vunpack.c.h.b16 %v1105
    %v1627 = vunpack.c.l.b16 %v1106
    %v1628 = vunpack.c.h.b16 %v1106
    %v1629 = vunpack.c.l.b16 %v1107
    %v1630 = vunpack.c.h.b16 %v1107
    %v1631 = vunpack.c.l.b16 %v1108
    %v1632 = vunpack.c.h.b16 %v1108
    %v1633 = vunpack.c.l.b16 %v1109
    %v1634 = vunpack.c.h.b16 %v1109
    %v1635 = vunpack.c.l.b16 %v1110
    %v1636 = vunpack.c.h.b16 %v1110
    %v1637 = vunpack.c.l.b16 %v1111
    %v1638 = vunpack.c.h.b16 %v1111
    %v1639 = vunpack.c.l.b16 %v1112
    %v1640 = vunpack.c.h.b16 %v1112
    %v1641 = vunpack.c.l.b16 %v1113
    %v1642 = vunpack.c.h.b16 %v1113
    %v1643 = vunpack.c.l.b16 %v1114
    %v1644 = vunpack.c.h.b16 %v1114
    %v1645 = vunpack.c.l.b16 %v1115
    %v1646 = vunpack.c.h.b16 %v1115
    %v1647 = vunpack.c.l.b16 %v1116
    %v1648 = vunpack.c.h.b16 %v1116
    %v1649 = vunpack.c.l.b16 %v1117
    %v1650 = vunpack.c.h.b16 %v1117
    %v1651 = vunpack.c.l.b16 %v1118
    %v1652 = vunpack.c.h.b16 %v1118
    %v1653 = vunpack.c.l.b16 %v1119
    %v1654 = vunpack.c.h.b16 %v1119
    %v1655 = vunpack.c.l.b16 %v1120
    %v1656 = vunpack.c.h.b16 %v1120
    %v1657 = vunpack.c.l.b16 %v1121
    %v1658 = vunpack.c.h.b16 %v1121
    %v1659 = vunpack.c.l.b16 %v1122
    %v1660 = vunpack.c.h.b16 %v1122
    %v1661 = vunpack.c.l.b16 %v1123
    %v1662 = vunpack.c.h.b16 %v1123
    %v1663 = vunpack.c.l.b16 %v1124
    %v1664 = vunpack.c.h.b16 %v1124
    %v1665 = vunpack.c.l.b16 %v1125
    %v1666 = vunpack.c.h.b16 %v1125
    %v1667 = vunpack.c.l.b16 %v1126
    %v1668 = vunpack.c.h.b16 %v1126
    %v1669 = vunpack.c.l.b16 %v1127
    %v1670 = vunpack.c.h.b16 %v1127
    %v1671 = vunpack.c.l.b16 %v1128
    %v1672 = vunpack.c.h.b16 %v1128
    %v1673 = vunpack.c.l.b16 %v1129
    %v1674 = vunpack.c.h.b16 %v1129
    %v1675 = vunpack.c.l.b16 %v1130
    %v1676 = vunpack.c.h.b16 %v1130
    %v1677 = vunpack.c.l.b16 %v1131
    %v1678 = vunpack.c.h.b16 %v1131
    %v1679 = vunpack.c.l.b16 %v1132
    %v1680 = vunpack.c.h.b16 %v1132
    %v1681 = vunpack.c.l.b16 %v1133
    %v1682 = vunpack.c.h.b16 %v1133
    %v1683 = vunpack.c.l.b16 %v1134
    %v1684 = vunpack.c.h.b16 %v1134
    %v1685 = vunpack.c.l.b16 %v1135
    %v1686 = vunpack.c.h.b16 %v1135
    %v1687 = vunpack.c.l.b16 %v1136
    %v1688 = vunpack.c.h.b16 %v1136
    %v1689 = vunpack.c.l.b16 %v1137
    %v1690 = vunpack.c.h.b16 %v1137
    %v1691 = vunpack.c.l.b16 %v1138
    %v1692 = vunpack.c.h.b16 %v1138
    %v1693 = vunpack.c.l.b16 %v1139
    %v1694 = vunpack.c.h.b16 %v1139
    %v1695 = vunpack.c.l.b16 %v1140
    %v1696 = vunpack.c.h.b16 %v1140
    %v1697 = vunpack.c.l.b16 %v1141
    %v1698 = vunpack.c.h.b16 %v1141
    %v1699 = vunpack.c.l.b16 %v1142
    %v1700 = vunpack.c.h.b16 %v1142
    %v1701 = vunpack.c.l.b16 %v1143
    %v1702 = vunpack.c.h.b16 %v1143
    %v1703 = vunpack.c.l.b16 %v1144
    %v1704 = vunpack.c.h.b16 %v1144
    %v1705 = vunpack.c.l.b16 %v1145
    %v1706 = vunpack.c.h.b16 %v1145
    %v1707 = vunpack.c.l.b16 %v1146
    %v1708 = vunpack.c.h.b16 %v1146
    %v1709 = vunpack.c.l.b16 %v1147
    %v1710 = vunpack.c.h.b16 %v1147
    %v1711 = vunpack.c.l.b16 %v1148
    %v1712 = vunpack.c.h.b16 %v1148
    %v1713 = vunpack.c.l.b16 %v1149
    %v1714 = vunpack.c.h.b16 %v1149
    %v1715 = vunpack.c.l.b16 %v1150
    %v1716 = vunpack.c.h.b16 %v1150
    %v1717 = vunpack.c.l.b16 %v1151
    %v1718 = vunpack.c.h.b16 %v1151
    %v1719 = vunpack.c.l.b16 %v1152
    %v1720 = vunpack.c.h.b16 %v1152
    %v1721 = vunpack.c.l.b16 %v1153
    %v1722 = vunpack.c.h.b16 %v1153
    %v1723 = vunpack.c.l.b16 %v1154
    %v1724 = vunpack.c.h.b16 %v1154
    %v1725 = vunpack.c.l.b16 %v1155
    %v1726 = vunpack.c.h.b16 %v1155
    %v1727 = vunpack.c.l.b16 %v1156
    %v1728 = vunpack.c.h.b16 %v1156
    %v1729 = vunpack.c.l.b16 %v1157
    %v1730 = vunpack.c.h.b16 %v1157
    %v1731 = vunpack.c.l.b16 %v1158
    %v1732 = vunpack.c.h.b16 %v1158
    %v1733 = vunpack.c.l.b16 %v1159
    %v1734 = vunpack.c.h.b16 %v1159
    %v1735 = vunpack.c.l.b16 %v1160
    %v1736 = vunpack.c.h.b16 %v1160
    %v1737 = vunpack.c.l.b16 %v1161
    %v1738 = vunpack.c.h.b16 %v1161
    %v1739 = vunpack.c.l.b16 %v1162
    %v1740 = vunpack.c.h.b16 %v1162
    %v1741 = vunpack.c.l.b16 %v1163
    %v1742 = vunpack.c.h.b16 %v1163
    %v1743 = vunpack.c.l.b16 %v1164
    %v1744 = vunpack.c.h.b16 %v1164
    %v1745 = vunpack.c.l.b16 %v1165
    %v1746 = vunpack.c.h.b16 %v1165
    %v1747 = vunpack.c.l.b16 %v1166
    %v1748 = vunpack.c.h.b16 %v1166
    %v1749 = vunpack.c.l.b16 %v1167
    %v1750 = vunpack.c.h.b16 %v1167
    %v1751 = vunpack.c.l.b16 %v1168
    %v1752 = vunpack.c.h.b16 %v1168
    %v1753 = vunpack.c.l.b16 %v1169
    %v1754 = vunpack.c.h.b16 %v1169
    %v1755 = vunpack.c.l.b16 %v1170
    %v1756 = vunpack.c.h.b16 %v1170
    %v1757 = vunpack.c.l.b16 %v1171
    %v1758 = vunpack.c.h.b16 %v1171
    %v1759 = vunpack.c.l.b16 %v1172
    %v1760 = vunpack.c.h.b16 %v1172
    %v1761 = vunpack.c.l.b16 %v1173
    %v1762 = vunpack.c.h.b16 %v1173
    %v1763 = vunpack.c.l.b16 %v1174
    %v1764 = vunpack.c.h.b16 %v1174
    %v1765 = vunpack.c.l.b16 %v1175
    %v1766 = vunpack.c.h.b16 %v1175
    %v1767 = vunpack.c.l.b16 %v1176
    %v1768 = vunpack.c.h.b16 %v1176
    %v1769 = vunpack.c.l.b16 %v1177
    %v1770 = vunpack.c.h.b16 %v1177
    %v1771 = vunpack.c.l.b16 %v1178
    %v1772 = vunpack.c.h.b16 %v1178
    %v1773 = vunpack.c.l.b16 %v1179
    %v1774 = vunpack.c.h.b16 %v1179
    %v1775 = vunpack.c.l.b16 %v1180
    %v1776 = vunpack.c.h.b16 %v1180
    %v1777 = vunpack.c.l.b16 %v1181
    %v1778 = vunpack.c.h.b16 %v1181
    %v1779 = vunpack.c.l.b16 %v1182
    %v1780 = vunpack.c.h.b16 %v1182
    %v1781 = vunpack.c.l.b16 %v1183
    %v1782 = vunpack.c.h.b16 %v1183
    %v1783 = vunpack.c.l.b16 %v1184
    %v1784 = vunpack.c.h.b16 %v1184
    %v1785 = vunpack.c.l.b16 %v1185
    %v1786 = vunpack.c.h.b16 %v1185
    %v1787 = vunpack.c.l.b16 %v1186
    %v1788 = vunpack.c.h.b16 %v1186
    %v1789 = vunpack.c.l.b16 %v1187
    %v1790 = vunpack.c.h.b16 %v1187
    %v1791 = vunpack.c.l.b16 %v1188
    %v1792 = vunpack.c.h.b16 %v1188
    %v1793 = vunpack.c.l.b16 %v1189
    %v1794 = vunpack.c.h.b16 %v1189
    %v1795 = vunpack.c.l.b16 %v1190
    %v1796 = vunpack.c.h.b16 %v1190
    %v1797 = vunpack.c.l.b16 %v1191
    %v1798 = vunpack.c.h.b16 %v1191
    %v1799 = vunpack.c.l.b16 %v1192
    %v1800 = vunpack.c.h.b16 %v1192
    %v1801 = vpack.c.b16 %v1613, %v1609
    %v1802 = vpack.c.b16 %v1614, %v1610
    %v1803 = vpack.c.b16 %v1615, %v1611
    %v1804 = vpack.c.b16 %v1616, %v1612
    %v1805 = vpack.c.b16 %v1621, %v1617
    %v1806 = vpack.c.b16 %v1622, %v1618
    %v1807 = vpack.c.b16 %v1623, %v1619
    %v1808 = vpack.c.b16 %v1624, %v1620
    %v1809 = vpack.c.b16 %v1629, %v1625
    %v1810 = vpack.c.b16 %v1630, %v1626
    %v1811 = vpack.c.b16 %v1631, %v1627
    %v1812 = vpack.c.b16 %v1632, %v1628
    %v1813 = vpack.c.b16 %v1637, %v1633
    %v1814 = vpack.c.b16 %v1638, %v1634
    %v1815 = vpack.c.b16 %v1639, %v1635
    %v1816 = vpack.c.b16 %v1640, %v1636
    %v1817 = vpack.c.b16 %v1645, %v1641
    %v1818 = vpack.c.b16 %v1646, %v1642
    %v1819 = vpack.c.b16 %v1647, %v1643
    %v1820 = vpack.c.b16 %v1648, %v1644
    %v1821 = vpack.c.b16 %v1653, %v1649
    %v1822 = vpack.c.b16 %v1654, %v1650
    %v1823 = vpack.c.b16 %v1655, %v1651
    %v1824 = vpack.c.b16 %v1656, %v1652
    %v1825 = vpack.c.b16 %v1661, %v1657
    %v1826 = vpack.c.b16 %v1662, %v1658
    %v1827 = vpack.c.b16 %v1663, %v1659
    %v1828 = vpack.c.b16 %v1664, %v1660
    %v1829 = vpack.c.b16 %v1669, %v1665
    %v1830 = vpack.c.b16 %v1670, %v1666
    %v1831 = vpack.c.b16 %v1671, %v1667
    %v1832 = vpack.c.b16 %v1672, %v1668
    %v1833 = vpack.c.b16 %v1677, %v1673
    %v1834 = vpack.c.b16 %v1678, %v1674
    %v1835 = vpack.c.b16 %v1679, %v1675
    %v1836 = vpack.c.b16 %v1680, %v1676
    %v1837 = vpack.c.b16 %v1685, %v1681
    %v1838 = vpack.c.b16 %v1686, %v1682
    %v1839 = vpack.c.b16 %v1687, %v1683
    %v1840 = vpack.c.b16 %v1688, %v1684
    %v1841 = vpack.c.b16 %v1693, %v1689
    %v1842 = vpack.c.b16 %v1694, %v1690
    %v1843 = vpack.c.b16 %v1695, %v1691
    %v1844 = vpack.c.b16 %v1696, %v1692
    %v1845 = vpack.c.b16 %v1701, %v1697
    %v1846 = vpack.c.b16 %v1702, %v1698
    %v1847 = vpack.c.b16 %v1703, %v1699
    %v1848 = vpack.c.b16 %v1704, %v1700
    %v1849 = vpack.c.b16 %v1709, %v1705
    %v1850 = vpack.c.b16 %v1710, %v1706
    %v1851 = vpack.c.b16 %v1711, %v1707
    %v1852 = vpack.c.b16 %v1712, %v1708
    %v1853 = vpack.c.b16 %v1717, %v1713
    %v1854 = vpack.c.b16 %v1718, %v1714
    %v1855 = vpack.c.b16 %v1719, %v1715
    %v1856 = vpack.c.b16 %v1720, %v1716
    %v1857 = vpack.c.b16 %v1725, %v1721
    %v1858 = vpack.c.b16 %v1726, %v1722
    %v1859 = vpack.c.b16 %v1727, %v1723
    %v1860 = vpack.c.b16 %v1728, %v1724
    %v1861 = vpack.c.b16 %v1733, %v1729
    %v1862 = vpack.c.b16 %v1734, %v1730
    %v1863 = vpack.c.b16 %v1735, %v1731
    %v1864 = vpack.c.b16 %v1736, %v1732
    %v1865 = vpack.c.b16 %v1741, %v1737
    %v1866 = vpack.c.b16 %v1742, %v1738
    %v1867 = vpack.c.b16 %v1743, %v1739
    %v1868 = vpack.c.b16 %v1744, %v1740
    %v1869 = vpack.c.b16 %v1749, %v1745
    %v1870 = vpack.c.b16 %v1750, %v1746
    %v1871 = vpack.c.b16 %v1751, %v1747
    %v1872 = vpack.c.b16 %v1752, %v1748
    %v1873 = vpack.c.b16 %v1757, %v1753
    %v1874 = vpack.c.b16 %v1758, %v1754
    %v1875 = vpack.c.b16 %v1759, %v1755
    %v1876 = vpack.c.b16 %v1760, %v1756
    %v1877 = vpack.c.b16 %v1765, %v1761
    %v1878 = vpack.c.b16 %v1766, %v1762
    %v1879 = vpack.c.b16 %v1767, %v1763
    %v1880 = vpack.c.b16 %v1768, %v1764
    %v1881 = vpack.c.b16 %v1773, %v1769
    %v1882 = vpack.c.b16 %v1774, %v1770
    %v1883 = vpack.c.b16 %v1775, %v1771
    %v1884 = vpack.c.b16 %v1776, %v1772
    %v1885 = vpack.c.b16 %v1781, %v1777
    %v1886 = vpack.c.b16 %v1782, %v1778
    %v1887 = vpack.c.b16 %v1783, %v1779
    %v1888 = vpack.c.b16 %v1784, %v1780
    %v1889 = vpack.c.b16 %v1789, %v1785
    %v1890 = vpack.c.b16 %v1790, %v1786
    %v1891 = vpack.c.b16 %v1791, %v1787
    %v1892 = vpack.c.b16 %v1792, %v1788
    %v1893 = vpack.c.b16 %v1797, %v1793
    %v1894 = vpack.c.b16 %v1798, %v1794
    %v1895 = vpack.c.b16 %v1799, %v1795
    %v1896 = vpack.c.b16 %v1800, %v1796
    %1993 = vmatprep.subr.bf16.mxu0 0
    %1994 = vmatpush1.bf16.msra.mxu0 %v1193
    %1995 = vmatprep.subr.bf16.mxu0 0
    %1996 = vmatpush1.bf16.msra.mxu0 %v1194
    %1997 = vmatprep.subr.bf16.mxu0 0
    %1998 = vmatpush1.bf16.msra.mxu0 %v1195
    %1999 = vmatprep.subr.bf16.mxu0 0
    %2000 = vmatpush1.bf16.msra.mxu0 %v1196
    %2001 = vmatprep.subr.bf16.mxu0 0
    %2002 = vmatpush1.bf16.msra.mxu0 %v1197
    %2003 = vmatprep.subr.bf16.mxu0 0
    %2004 = vmatpush1.bf16.msra.mxu0 %v1198
    %2005 = vmatprep.subr.bf16.mxu0 0
    %2006 = vmatpush1.bf16.msra.mxu0 %v1199
    %2007 = vmatprep.subr.bf16.mxu0 0
    %2008 = vmatpush1.bf16.msra.mxu0 %v1200
    %2009 = vmatprep.subr.bf16.mxu0 0
    %2010 = vmatpush1.bf16.msra.mxu0 %v1201
    %2011 = vmatprep.subr.bf16.mxu0 0
    %2012 = vmatpush1.bf16.msra.mxu0 %v1202
    %2013 = vmatprep.subr.bf16.mxu0 0
    %2014 = vmatpush1.bf16.msra.mxu0 %v1203
    %2015 = vmatprep.subr.bf16.mxu0 0
    %2016 = vmatpush1.bf16.msra.mxu0 %v1204
    %2017 = vmatprep.subr.bf16.mxu0 0
    %2018 = vmatpush1.bf16.msra.mxu0 %v1205
    %2019 = vmatprep.subr.bf16.mxu0 0
    %2020 = vmatpush1.bf16.msra.mxu0 %v1206
    %2021 = vmatprep.subr.bf16.mxu0 0
    %2022 = vmatpush1.bf16.msra.mxu0 %v1207
    %2023 = vmatprep.subr.bf16.mxu0 0
    %2024 = vmatpush1.bf16.msra.mxu0 %v1208
    %2025 = vmatprep.mubr.bf16.mxu0 %v1802
    %2026 = vmatmul.mubr.bf16.gmra.mrb[0].mxu0 %v1801
    %v2027 = vpop.f32.mrb[0].mxu0
    %v2028 = vadd.f32 %v1276, %v2027
    %v2029 = vpop.f32.mrb[0].mxu0
    %v2030 = vpop.f32.mrb[0].mxu0
    %v2031 = vadd.f32 %v1281, %v2030
    %v2032 = vpop.f32.mrb[0].mxu0
    %2033 = vmatprep.mubr.bf16.mxu0 %v1806
    %2034 = vmatmul.mubr.bf16.gmra.mrb[0].mxu0 %v1805
    %v2035 = vpop.f32.mrb[0].mxu0
    %v2036 = vadd.f32 %v1286, %v2035
    %v2037 = vpop.f32.mrb[0].mxu0
    %v2038 = vpop.f32.mrb[0].mxu0
    %v2039 = vadd.f32 %v1291, %v2038
    %v2040 = vpop.f32.mrb[0].mxu0
    %2041 = vmatprep.mubr.bf16.mxu0 %v1810
    %2042 = vmatmul.mubr.bf16.gmra.mrb[0].mxu0 %v1809
    %v2043 = vpop.f32.mrb[0].mxu0
    %v2044 = vadd.f32 %v1296, %v2043
    %v2045 = vpop.f32.mrb[0].mxu0
    %v2046 = vpop.f32.mrb[0].mxu0
    %v2047 = vadd.f32 %v1301, %v2046
    %v2048 = vpop.f32.mrb[0].mxu0
    %2049 = vmatprep.mubr.bf16.mxu0 %v1814
    %2050 = vmatmul.mubr.bf16.gmra.mrb[0].mxu0 %v1813
    %v2051 = vpop.f32.mrb[0].mxu0
    %v2052 = vadd.f32 %v1306, %v2051
    %v2053 = vpop.f32.mrb[0].mxu0
    %v2054 = vpop.f32.mrb[0].mxu0
    %v2055 = vadd.f32 %v1311, %v2054
    %v2056 = vpop.f32.mrb[0].mxu0
    %2057 = vmatprep.mubr.bf16.mxu0 %v1818
    %2058 = vmatmul.mubr.bf16.gmra.mrb[0].mxu0 %v1817
    %v2059 = vpop.f32.mrb[0].mxu0
    %v2060 = vadd.f32 %v1316, %v2059
    %v2061 = vpop.f32.mrb[0].mxu0
    %v2062 = vpop.f32.mrb[0].mxu0
    %v2063 = vadd.f32 %v1321, %v2062
    %v2064 = vpop.f32.mrb[0].mxu0
    %2065 = vmatprep.mubr.bf16.mxu0 %v1822
    %2066 = vmatmul.mubr.bf16.gmra.mrb[0].mxu0 %v1821
    %v2067 = vpop.f32.mrb[0].mxu0
    %v2068 = vadd.f32 %v1326, %v2067
    %v2069 = vpop.f32.mrb[0].mxu0
    %v2070 = vpop.f32.mrb[0].mxu0
    %v2071 = vadd.f32 %v1331, %v2070
    %v2072 = vpop.f32.mrb[0].mxu0
    %2073 = vmatprep.mubr.bf16.mxu0 %v1826
    %2074 = vmatmul.mubr.bf16.gmra.mrb[0].mxu0 %v1825
    %v2075 = vpop.f32.mrb[0].mxu0
    %v2076 = vadd.f32 %v1336, %v2075
    %v2077 = vpop.f32.mrb[0].mxu0
    %v2078 = vpop.f32.mrb[0].mxu0
    %v2079 = vadd.f32 %v1341, %v2078
    %v2080 = vpop.f32.mrb[0].mxu0
    %2081 = vmatprep.mubr.bf16.mxu0 %v1830
    %2082 = vmatmul.mubr.bf16.gmra.mrb[0].mxu0 %v1829
    %v2083 = vpop.f32.mrb[0].mxu0
    %v2084 = vadd.f32 %v1346, %v2083
    %v2085 = vpop.f32.mrb[0].mxu0
    %v2086 = vpop.f32.mrb[0].mxu0
    %v2087 = vadd.f32 %v1351, %v2086
    %v2088 = vpop.f32.mrb[0].mxu0
    %2089 = vmatprep.mubr.bf16.mxu0 %v1834
    %2090 = vmatmul.mubr.bf16.gmra.mrb[0].mxu0 %v1833
    %v2091 = vpop.f32.mrb[0].mxu0
    %v2092 = vadd.f32 %v1356, %v2091
    %v2093 = vpop.f32.mrb[0].mxu0
    %v2094 = vpop.f32.mrb[0].mxu0
    %v2095 = vadd.f32 %v1361, %v2094
    %v2096 = vpop.f32.mrb[0].mxu0
    %2097 = vmatprep.mubr.bf16.mxu0 %v1838
    %2098 = vmatmul.mubr.bf16.gmra.mrb[0].mxu0 %v1837
    %v2099 = vpop.f32.mrb[0].mxu0
    %v2100 = vadd.f32 %v1366, %v2099
    %v2101 = vpop.f32.mrb[0].mxu0
    %v2102 = vpop.f32.mrb[0].mxu0
    %v2103 = vadd.f32 %v1371, %v2102
    %v2104 = vpop.f32.mrb[0].mxu0
    %2105 = vmatprep.mubr.bf16.mxu0 %v1842
    %2106 = vmatmul.mubr.bf16.gmra.mrb[0].mxu0 %v1841
    %v2107 = vpop.f32.mrb[0].mxu0
    %v2108 = vadd.f32 %v1376, %v2107
    %v2109 = vpop.f32.mrb[0].mxu0
    %v2110 = vpop.f32.mrb[0].mxu0
    %v2111 = vadd.f32 %v1381, %v2110
    %v2112 = vpop.f32.mrb[0].mxu0
    %2113 = vmatprep.mubr.bf16.mxu0 %v1846
    %2114 = vmatmul.mubr.bf16.gmra.mrb[0].mxu0 %v1845
    %v2115 = vpop.f32.mrb[0].mxu0
    %v2116 = vadd.f32 %v1386, %v2115
    %v2117 = vpop.f32.mrb[0].mxu0
    %v2118 = vpop.f32.mrb[0].mxu0
    %v2119 = vadd.f32 %v1391, %v2118
    %v2120 = vpop.f32.mrb[0].mxu0
    %2121 = vmatprep.mubr.bf16.mxu0 %v1850
    %2122 = vmatmul.mubr.bf16.gmra.mrb[0].mxu0 %v1849
    %v2123 = vpop.f32.mrb[0].mxu0
    %v2124 = vadd.f32 %v1396, %v2123
    %v2125 = vpop.f32.mrb[0].mxu0
    %v2126 = vpop.f32.mrb[0].mxu0
    %v2127 = vadd.f32 %v1401, %v2126
    %v2128 = vpop.f32.mrb[0].mxu0
    %2129 = vmatprep.mubr.bf16.mxu0 %v1854
    %2130 = vmatmul.mubr.bf16.gmra.mrb[0].mxu0 %v1853
    %v2131 = vpop.f32.mrb[0].mxu0
    %v2132 = vadd.f32 %v1406, %v2131
    %v2133 = vpop.f32.mrb[0].mxu0
    %v2134 = vpop.f32.mrb[0].mxu0
    %v2135 = vadd.f32 %v1411, %v2134
    %v2136 = vpop.f32.mrb[0].mxu0
    %2137 = vmatprep.mubr.bf16.mxu0 %v1858
    %2138 = vmatmul.mubr.bf16.gmra.mrb[0].mxu0 %v1857
    %v2139 = vpop.f32.mrb[0].mxu0
    %v2140 = vadd.f32 %v1416, %v2139
    %v2141 = vpop.f32.mrb[0].mxu0
    %v2142 = vpop.f32.mrb[0].mxu0
    %v2143 = vadd.f32 %v1421, %v2142
    %v2144 = vpop.f32.mrb[0].mxu0
    %2145 = vmatprep.mubr.bf16.mxu0 %v1862
    %2146 = vmatmul.mubr.bf16.gmra.mrb[0].mxu0 %v1861
    %v2147 = vpop.f32.mrb[0].mxu0
    %v2148 = vadd.f32 %v1426, %v2147
    %v2149 = vpop.f32.mrb[0].mxu0
    %v2150 = vpop.f32.mrb[0].mxu0
    %v2151 = vadd.f32 %v1431, %v2150
    %v2152 = vpop.f32.mrb[0].mxu0
    %2153 = vmatprep.mubr.bf16.mxu0 %v1866
    %2154 = vmatmul.mubr.bf16.gmra.mrb[0].mxu0 %v1865
    %v2155 = vpop.f32.mrb[0].mxu0
    %v2156 = vadd.f32 %v1436, %v2155
    %v2157 = vpop.f32.mrb[0].mxu0
    %v2158 = vpop.f32.mrb[0].mxu0
    %v2159 = vadd.f32 %v1441, %v2158
    %v2160 = vpop.f32.mrb[0].mxu0
    %2161 = vmatprep.mubr.bf16.mxu0 %v1870
    %2162 = vmatmul.mubr.bf16.gmra.mrb[0].mxu0 %v1869
    %v2163 = vpop.f32.mrb[0].mxu0
    %v2164 = vadd.f32 %v1446, %v2163
    %v2165 = vpop.f32.mrb[0].mxu0
    %v2166 = vpop.f32.mrb[0].mxu0
    %v2167 = vadd.f32 %v1451, %v2166
    %v2168 = vpop.f32.mrb[0].mxu0
    %2169 = vmatprep.mubr.bf16.mxu0 %v1874
    %2170 = vmatmul.mubr.bf16.gmra.mrb[0].mxu0 %v1873
    %v2171 = vpop.f32.mrb[0].mxu0
    %v2172 = vadd.f32 %v1456, %v2171
    %v2173 = vpop.f32.mrb[0].mxu0
    %v2174 = vpop.f32.mrb[0].mxu0
    %v2175 = vadd.f32 %v1461, %v2174
    %v2176 = vpop.f32.mrb[0].mxu0
    %2177 = vmatprep.mubr.bf16.mxu0 %v1878
    %2178 = vmatmul.mubr.bf16.gmra.mrb[0].mxu0 %v1877
    %v2179 = vpop.f32.mrb[0].mxu0
    %v2180 = vadd.f32 %v1466, %v2179
    %v2181 = vpop.f32.mrb[0].mxu0
    %v2182 = vpop.f32.mrb[0].mxu0
    %v2183 = vadd.f32 %v1471, %v2182
    %v2184 = vpop.f32.mrb[0].mxu0
    %2185 = vmatprep.mubr.bf16.mxu0 %v1882
    %2186 = vmatmul.mubr.bf16.gmra.mrb[0].mxu0 %v1881
    %v2187 = vpop.f32.mrb[0].mxu0
    %v2188 = vadd.f32 %v1476, %v2187
    %v2189 = vpop.f32.mrb[0].mxu0
    %v2190 = vpop.f32.mrb[0].mxu0
    %v2191 = vadd.f32 %v1481, %v2190
    %v2192 = vpop.f32.mrb[0].mxu0
    %2193 = vmatprep.mubr.bf16.mxu0 %v1886
    %2194 = vmatmul.mubr.bf16.gmra.mrb[0].mxu0 %v1885
    %v2195 = vpop.f32.mrb[0].mxu0
    %v2196 = vadd.f32 %v1486, %v2195
    %v2197 = vpop.f32.mrb[0].mxu0
    %v2198 = vpop.f32.mrb[0].mxu0
    %v2199 = vadd.f32 %v1491, %v2198
    %v2200 = vpop.f32.mrb[0].mxu0
    %2201 = vmatprep.mubr.bf16.mxu0 %v1890
    %2202 = vmatmul.mubr.bf16.gmra.mrb[0].mxu0 %v1889
    %v2203 = vpop.f32.mrb[0].mxu0
    %v2204 = vadd.f32 %v1496, %v2203
    %v2205 = vpop.f32.mrb[0].mxu0
    %v2206 = vpop.f32.mrb[0].mxu0
    %v2207 = vadd.f32 %v1501, %v2206
    %v2208 = vpop.f32.mrb[0].mxu0
    %2209 = vmatprep.mubr.bf16.mxu0 %v1894
    %2210 = vmatmul.mubr.bf16.gmra.mrb[0].mxu0 %v1893
    %v2211 = vpop.f32.mrb[0].mxu0
    %v2212 = vadd.f32 %v1506, %v2211
    %v2213 = vpop.f32.mrb[0].mxu0
    %v2214 = vpop.f32.mrb[0].mxu0
    %v2215 = vadd.f32 %v1511, %v2214
    %v2216 = vpop.f32.mrb[0].mxu0
    %2217 = vdwg.mxu0
    %2218 = vmatprep.subr.bf16.mxu0 0
    %2219 = vmatpush1.bf16.msra.mxu0 %v1209
    %2220 = vmatprep.subr.bf16.mxu0 0
    %2221 = vmatpush1.bf16.msra.mxu0 %v1210
    %2222 = vmatprep.subr.bf16.mxu0 0
    %2223 = vmatpush1.bf16.msra.mxu0 %v1211
    %2224 = vmatprep.subr.bf16.mxu0 0
    %2225 = vmatpush1.bf16.msra.mxu0 %v1212
    %2226 = vmatprep.subr.bf16.mxu0 0
    %2227 = vmatpush1.bf16.msra.mxu0 %v1213
    %2228 = vmatprep.subr.bf16.mxu0 0
    %2229 = vmatpush1.bf16.msra.mxu0 %v1214
    %2230 = vmatprep.subr.bf16.mxu0 0
    %2231 = vmatpush1.bf16.msra.mxu0 %v1215
    %2232 = vmatprep.subr.bf16.mxu0 0
    %2233 = vmatpush1.bf16.msra.mxu0 %v1216
    %2234 = vmatprep.subr.bf16.mxu0 0
    %2235 = vmatpush1.bf16.msra.mxu0 %v1217
    %2236 = vmatprep.subr.bf16.mxu0 0
    %2237 = vmatpush1.bf16.msra.mxu0 %v1218
    %2238 = vmatprep.subr.bf16.mxu0 0
    %2239 = vmatpush1.bf16.msra.mxu0 %v1219
    %2240 = vmatprep.subr.bf16.mxu0 0
    %2241 = vmatpush1.bf16.msra.mxu0 %v1220
    %2242 = vmatprep.subr.bf16.mxu0 0
    %2243 = vmatpush1.bf16.msra.mxu0 %v1221
    %2244 = vmatprep.subr.bf16.mxu0 0
    %2245 = vmatpush1.bf16.msra.mxu0 %v1222
    %2246 = vmatprep.subr.bf16.mxu0 0
    %2247 = vmatpush1.bf16.msra.mxu0 %v1223
    %2248 = vmatprep.subr.bf16.mxu0 0
    %2249 = vmatpush1.bf16.msra.mxu0 %v1224
    %2250 = vmatprep.mubr.bf16.mxu0 %v1804
    %2251 = vmatmul.mubr.bf16.gmra.mrb[0].mxu0 %v1803
    %v2252 = vpop.f32.mrb[0].mxu0
    %v2253 = vadd.f32 %v2028, %v2252
    %v2254 = vpop.f32.mrb[0].mxu0
    %v2255 = vpop.f32.mrb[0].mxu0
    %v2256 = vadd.f32 %v2031, %v2255
    %v2257 = vpop.f32.mrb[0].mxu0
    %2258 = vmatprep.mubr.bf16.mxu0 %v1808
    %2259 = vmatmul.mubr.bf16.gmra.mrb[0].mxu0 %v1807
    %v2260 = vpop.f32.mrb[0].mxu0
    %v2261 = vadd.f32 %v2036, %v2260
    %v2262 = vpop.f32.mrb[0].mxu0
    %v2263 = vpop.f32.mrb[0].mxu0
    %v2264 = vadd.f32 %v2039, %v2263
    %v2265 = vpop.f32.mrb[0].mxu0
    %2266 = vmatprep.mubr.bf16.mxu0 %v1812
    %2267 = vmatmul.mubr.bf16.gmra.mrb[0].mxu0 %v1811
    %v2268 = vpop.f32.mrb[0].mxu0
    %v2269 = vadd.f32 %v2044, %v2268
    %v2270 = vpop.f32.mrb[0].mxu0
    %v2271 = vpop.f32.mrb[0].mxu0
    %v2272 = vadd.f32 %v2047, %v2271
    %v2273 = vpop.f32.mrb[0].mxu0
    %2274 = vmatprep.mubr.bf16.mxu0 %v1816
    %2275 = vmatmul.mubr.bf16.gmra.mrb[0].mxu0 %v1815
    %v2276 = vpop.f32.mrb[0].mxu0
    %v2277 = vadd.f32 %v2052, %v2276
    %v2278 = vpop.f32.mrb[0].mxu0
    %v2279 = vpop.f32.mrb[0].mxu0
    %v2280 = vadd.f32 %v2055, %v2279
    %v2281 = vpop.f32.mrb[0].mxu0
    %2282 = vmatprep.mubr.bf16.mxu0 %v1820
    %2283 = vmatmul.mubr.bf16.gmra.mrb[0].mxu0 %v1819
    %v2284 = vpop.f32.mrb[0].mxu0
    %v2285 = vadd.f32 %v2060, %v2284
    %v2286 = vpop.f32.mrb[0].mxu0
    %v2287 = vpop.f32.mrb[0].mxu0
    %v2288 = vadd.f32 %v2063, %v2287
    %v2289 = vpop.f32.mrb[0].mxu0
    %2290 = vmatprep.mubr.bf16.mxu0 %v1824
    %2291 = vmatmul.mubr.bf16.gmra.mrb[0].mxu0 %v1823
    %v2292 = vpop.f32.mrb[0].mxu0
    %v2293 = vadd.f32 %v2068, %v2292
    %v2294 = vpop.f32.mrb[0].mxu0
    %v2295 = vpop.f32.mrb[0].mxu0
    %v2296 = vadd.f32 %v2071, %v2295
    %v2297 = vpop.f32.mrb[0].mxu0
    %2298 = vmatprep.mubr.bf16.mxu0 %v1828
    %2299 = vmatmul.mubr.bf16.gmra.mrb[0].mxu0 %v1827
    %v2300 = vpop.f32.mrb[0].mxu0
    %v2301 = vadd.f32 %v2076, %v2300
    %v2302 = vpop.f32.mrb[0].mxu0
    %v2303 = vpop.f32.mrb[0].mxu0
    %v2304 = vadd.f32 %v2079, %v2303
    %v2305 = vpop.f32.mrb[0].mxu0
    %2306 = vmatprep.mubr.bf16.mxu0 %v1832
    %2307 = vmatmul.mubr.bf16.gmra.mrb[0].mxu0 %v1831
    %v2308 = vpop.f32.mrb[0].mxu0
    %v2309 = vadd.f32 %v2084, %v2308
    %v2310 = vpop.f32.mrb[0].mxu0
    %v2311 = vpop.f32.mrb[0].mxu0
    %v2312 = vadd.f32 %v2087, %v2311
    %v2313 = vpop.f32.mrb[0].mxu0
    %2314 = vmatprep.mubr.bf16.mxu0 %v1836
    %2315 = vmatmul.mubr.bf16.gmra.mrb[0].mxu0 %v1835
    %v2316 = vpop.f32.mrb[0].mxu0
    %v2317 = vadd.f32 %v2092, %v2316
    %v2318 = vpop.f32.mrb[0].mxu0
    %v2319 = vpop.f32.mrb[0].mxu0
    %v2320 = vadd.f32 %v2095, %v2319
    %v2321 = vpop.f32.mrb[0].mxu0
    %2322 = vmatprep.mubr.bf16.mxu0 %v1840
    %2323 = vmatmul.mubr.bf16.gmra.mrb[0].mxu0 %v1839
    %v2324 = vpop.f32.mrb[0].mxu0
    %v2325 = vadd.f32 %v2100, %v2324
    %v2326 = vpop.f32.mrb[0].mxu0
    %v2327 = vpop.f32.mrb[0].mxu0
    %v2328 = vadd.f32 %v2103, %v2327
    %v2329 = vpop.f32.mrb[0].mxu0
    %2330 = vmatprep.mubr.bf16.mxu0 %v1844
    %2331 = vmatmul.mubr.bf16.gmra.mrb[0].mxu0 %v1843
    %v2332 = vpop.f32.mrb[0].mxu0
    %v2333 = vadd.f32 %v2108, %v2332
    %v2334 = vpop.f32.mrb[0].mxu0
    %v2335 = vpop.f32.mrb[0].mxu0
    %v2336 = vadd.f32 %v2111, %v2335
    %v2337 = vpop.f32.mrb[0].mxu0
    %2338 = vmatprep.mubr.bf16.mxu0 %v1848
    %2339 = vmatmul.mubr.bf16.gmra.mrb[0].mxu0 %v1847
    %v2340 = vpop.f32.mrb[0].mxu0
    %v2341 = vadd.f32 %v2116, %v2340
    %v2342 = vpop.f32.mrb[0].mxu0
    %v2343 = vpop.f32.mrb[0].mxu0
    %v2344 = vadd.f32 %v2119, %v2343
    %v2345 = vpop.f32.mrb[0].mxu0
    %2346 = vmatprep.mubr.bf16.mxu0 %v1852
    %2347 = vmatmul.mubr.bf16.gmra.mrb[0].mxu0 %v1851
    %v2348 = vpop.f32.mrb[0].mxu0
    %v2349 = vadd.f32 %v2124, %v2348
    %v2350 = vpop.f32.mrb[0].mxu0
    %v2351 = vpop.f32.mrb[0].mxu0
    %v2352 = vadd.f32 %v2127, %v2351
    %v2353 = vpop.f32.mrb[0].mxu0
    %2354 = vmatprep.mubr.bf16.mxu0 %v1856
    %2355 = vmatmul.mubr.bf16.gmra.mrb[0].mxu0 %v1855
    %v2356 = vpop.f32.mrb[0].mxu0
    %v2357 = vadd.f32 %v2132, %v2356
    %v2358 = vpop.f32.mrb[0].mxu0
    %v2359 = vpop.f32.mrb[0].mxu0
    %v2360 = vadd.f32 %v2135, %v2359
    %v2361 = vpop.f32.mrb[0].mxu0
    %2362 = vmatprep.mubr.bf16.mxu0 %v1860
    %2363 = vmatmul.mubr.bf16.gmra.mrb[0].mxu0 %v1859
    %v2364 = vpop.f32.mrb[0].mxu0
    %v2365 = vadd.f32 %v2140, %v2364
    %v2366 = vpop.f32.mrb[0].mxu0
    %v2367 = vpop.f32.mrb[0].mxu0
    %v2368 = vadd.f32 %v2143, %v2367
    %v2369 = vpop.f32.mrb[0].mxu0
    %2370 = vmatprep.mubr.bf16.mxu0 %v1864
    %2371 = vmatmul.mubr.bf16.gmra.mrb[0].mxu0 %v1863
    %v2372 = vpop.f32.mrb[0].mxu0
    %v2373 = vadd.f32 %v2148, %v2372
    %v2374 = vpop.f32.mrb[0].mxu0
    %v2375 = vpop.f32.mrb[0].mxu0
    %v2376 = vadd.f32 %v2151, %v2375
    %v2377 = vpop.f32.mrb[0].mxu0
    %2378 = vmatprep.mubr.bf16.mxu0 %v1868
    %2379 = vmatmul.mubr.bf16.gmra.mrb[0].mxu0 %v1867
    %v2380 = vpop.f32.mrb[0].mxu0
    %v2381 = vadd.f32 %v2156, %v2380
    %v2382 = vpop.f32.mrb[0].mxu0
    %v2383 = vpop.f32.mrb[0].mxu0
    %v2384 = vadd.f32 %v2159, %v2383
    %v2385 = vpop.f32.mrb[0].mxu0
    %2386 = vmatprep.mubr.bf16.mxu0 %v1872
    %2387 = vmatmul.mubr.bf16.gmra.mrb[0].mxu0 %v1871
    %v2388 = vpop.f32.mrb[0].mxu0
    %v2389 = vadd.f32 %v2164, %v2388
    %v2390 = vpop.f32.mrb[0].mxu0
    %v2391 = vpop.f32.mrb[0].mxu0
    %v2392 = vadd.f32 %v2167, %v2391
    %v2393 = vpop.f32.mrb[0].mxu0
    %2394 = vmatprep.mubr.bf16.mxu0 %v1876
    %2395 = vmatmul.mubr.bf16.gmra.mrb[0].mxu0 %v1875
    %v2396 = vpop.f32.mrb[0].mxu0
    %v2397 = vadd.f32 %v2172, %v2396
    %v2398 = vpop.f32.mrb[0].mxu0
    %v2399 = vpop.f32.mrb[0].mxu0
    %v2400 = vadd.f32 %v2175, %v2399
    %v2401 = vpop.f32.mrb[0].mxu0
    %2402 = vmatprep.mubr.bf16.mxu0 %v1880
    %2403 = vmatmul.mubr.bf16.gmra.mrb[0].mxu0 %v1879
    %v2404 = vpop.f32.mrb[0].mxu0
    %v2405 = vadd.f32 %v2180, %v2404
    %v2406 = vpop.f32.mrb[0].mxu0
    %v2407 = vpop.f32.mrb[0].mxu0
    %v2408 = vadd.f32 %v2183, %v2407
    %v2409 = vpop.f32.mrb[0].mxu0
    %2410 = vmatprep.mubr.bf16.mxu0 %v1884
    %2411 = vmatmul.mubr.bf16.gmra.mrb[0].mxu0 %v1883
    %v2412 = vpop.f32.mrb[0].mxu0
    %v2413 = vadd.f32 %v2188, %v2412
    %v2414 = vpop.f32.mrb[0].mxu0
    %v2415 = vpop.f32.mrb[0].mxu0
    %v2416 = vadd.f32 %v2191, %v2415
    %v2417 = vpop.f32.mrb[0].mxu0
    %2418 = vmatprep.mubr.bf16.mxu0 %v1888
    %2419 = vmatmul.mubr.bf16.gmra.mrb[0].mxu0 %v1887
    %v2420 = vpop.f32.mrb[0].mxu0
    %v2421 = vadd.f32 %v2196, %v2420
    %v2422 = vpop.f32.mrb[0].mxu0
    %v2423 = vpop.f32.mrb[0].mxu0
    %v2424 = vadd.f32 %v2199, %v2423
    %v2425 = vpop.f32.mrb[0].mxu0
    %2426 = vmatprep.mubr.bf16.mxu0 %v1892
    %2427 = vmatmul.mubr.bf16.gmra.mrb[0].mxu0 %v1891
    %v2428 = vpop.f32.mrb[0].mxu0
    %v2429 = vadd.f32 %v2204, %v2428
    %v2430 = vpop.f32.mrb[0].mxu0
    %v2431 = vpop.f32.mrb[0].mxu0
    %v2432 = vadd.f32 %v2207, %v2431
    %v2433 = vpop.f32.mrb[0].mxu0
    %2434 = vmatprep.mubr.bf16.mxu0 %v1896
    %2435 = vmatmul.mubr.bf16.gmra.mrb[0].mxu0 %v1895
    %v2436 = vpop.f32.mrb[0].mxu0
    %v2437 = vadd.f32 %v2212, %v2436
    %v2438 = vpop.f32.mrb[0].mxu0
    %v2439 = vpop.f32.mrb[0].mxu0
    %v2440 = vadd.f32 %v2215, %v2439
    %v2441 = vpop.f32.mrb[0].mxu0
    %2442 = vdwg.mxu0
    %v2443 = vmax.f32 %v2253, 0.0
    %v2444 = vmax.f32 %v2256, 0.0
    %v2445 = vmax.f32 %v2261, 0.0
    %v2446 = vmax.f32 %v2264, 0.0
    %v2447 = vmax.f32 %v2269, 0.0
    %v2448 = vmax.f32 %v2272, 0.0
    %v2449 = vmax.f32 %v2277, 0.0
    %v2450 = vmax.f32 %v2280, 0.0
    %v2451 = vmax.f32 %v2285, 0.0
    %v2452 = vmax.f32 %v2288, 0.0
    %v2453 = vmax.f32 %v2293, 0.0
    %v2454 = vmax.f32 %v2296, 0.0
    %v2455 = vmax.f32 %v2301, 0.0
    %v2456 = vmax.f32 %v2304, 0.0
    %v2457 = vmax.f32 %v2309, 0.0
    %v2458 = vmax.f32 %v2312, 0.0
    %v2459 = vmax.f32 %v2317, 0.0
    %v2460 = vmax.f32 %v2320, 0.0
    %v2461 = vmax.f32 %v2325, 0.0
    %v2462 = vmax.f32 %v2328, 0.0
    %v2463 = vmax.f32 %v2333, 0.0
    %v2464 = vmax.f32 %v2336, 0.0
    %v2465 = vmax.f32 %v2341, 0.0
    %v2466 = vmax.f32 %v2344, 0.0
    %v2467 = vmax.f32 %v2349, 0.0
    %v2468 = vmax.f32 %v2352, 0.0
    %v2469 = vmax.f32 %v2357, 0.0
    %v2470 = vmax.f32 %v2360, 0.0
    %v2471 = vmax.f32 %v2365, 0.0
    %v2472 = vmax.f32 %v2368, 0.0
    %v2473 = vmax.f32 %v2373, 0.0
    %v2474 = vmax.f32 %v2376, 0.0
    %v2475 = vmax.f32 %v2381, 0.0
    %v2476 = vmax.f32 %v2384, 0.0
    %v2477 = vmax.f32 %v2389, 0.0
    %v2478 = vmax.f32 %v2392, 0.0
    %v2479 = vmax.f32 %v2397, 0.0
    %v2480 = vmax.f32 %v2400, 0.0
    %v2481 = vmax.f32 %v2405, 0.0
    %v2482 = vmax.f32 %v2408, 0.0
    %v2483 = vmax.f32 %v2413, 0.0
    %v2484 = vmax.f32 %v2416, 0.0
    %v2485 = vmax.f32 %v2421, 0.0
    %v2486 = vmax.f32 %v2424, 0.0
    %v2487 = vmax.f32 %v2429, 0.0
    %v2488 = vmax.f32 %v2432, 0.0
    %v2489 = vmax.f32 %v2437, 0.0
    %v2490 = vmax.f32 %v2440, 0.0
    %v2491 = vld [vmem:[%s5] sm:$0xff]
    %v2492 = vld [vmem:[%s5 + $0x8] sm:$0xff]
    %v2493 = vld [vmem:[%s5 + $0x10] sm:$0xff]
    %v2494 = vld [vmem:[%s5 + $0x18] sm:$0xff]
    %v2495 = vld [vmem:[%s5 + $0x20] sm:$0xff]
    %v2496 = vld [vmem:[%s5 + $0x28] sm:$0xff]
    %v2497 = vld [vmem:[%s5 + $0x30] sm:$0xff]
    %v2498 = vld [vmem:[%s5 + $0x38] sm:$0xff]
    %v2499 = vld [vmem:[%s5 + $0x40] sm:$0xff]
    %v2500 = vld [vmem:[%s5 + $0x48] sm:$0xff]
    %v2501 = vld [vmem:[%s5 + $0x50] sm:$0xff]
    %v2502 = vld [vmem:[%s5 + $0x58] sm:$0xff]
    %v2503 = vld [vmem:[%s5 + $0x60] sm:$0xff]
    %v2504 = vld [vmem:[%s5 + $0x68] sm:$0xff]
    %v2505 = vld [vmem:[%s5 + $0x70] sm:$0xff]
    %v2506 = vld [vmem:[%s5 + $0x78] sm:$0xff]
    %v2507 = vld [vmem:[%s5 + $0x80] sm:$0xff]
    %v2508 = vld [vmem:[%s5 + $0x88] sm:$0xff]
    %v2509 = vld [vmem:[%s5 + $0x90] sm:$0xff]
    %v2510 = vld [vmem:[%s5 + $0x98] sm:$0xff]
    %v2511 = vld [vmem:[%s5 + $0xa0] sm:$0xff]
    %v2512 = vld [vmem:[%s5 + $0xa8] sm:$0xff]
    %v2513 = vld [vmem:[%s5 + $0xb0] sm:$0xff]
    %v2514 = vld [vmem:[%s5 + $0xb8] sm:$0xff]
    %v2515 = vld [vmem:[%s5 + $0xc0] sm:$0xff]
    %v2516 = vld [vmem:[%s5 + $0xc8] sm:$0xff]
    %v2517 = vld [vmem:[%s5 + $0xd0] sm:$0xff]
    %v2518 = vld [vmem:[%s5 + $0xd8] sm:$0xff]
    %v2519 = vld [vmem:[%s5 + $0xe0] sm:$0xff]
    %v2520 = vld [vmem:[%s5 + $0xe8] sm:$0xff]
    %v2521 = vld [vmem:[%s5 + $0xf0] sm:$0xff]
    %v2522 = vld [vmem:[%s5 + $0xf8] sm:$0xff]
    %v2523 = vld [vmem:[%s5 + $0x100] sm:$0xff]
    %v2524 = vld [vmem:[%s5 + $0x108] sm:$0xff]
    %v2525 = vld [vmem:[%s5 + $0x110] sm:$0xff]
    %v2526 = vld [vmem:[%s5 + $0x118] sm:$0xff]
    %v2527 = vld [vmem:[%s5 + $0x120] sm:$0xff]
    %v2528 = vld [vmem:[%s5 + $0x128] sm:$0xff]
    %v2529 = vld [vmem:[%s5 + $0x130] sm:$0xff]
    %v2530 = vld [vmem:[%s5 + $0x138] sm:$0xff]
    %v2531 = vld [vmem:[%s5 + $0x140] sm:$0xff]
    %v2532 = vld [vmem:[%s5 + $0x148] sm:$0xff]
    %v2533 = vld [vmem:[%s5 + $0x150] sm:$0xff]
    %v2534 = vld [vmem:[%s5 + $0x158] sm:$0xff]
    %v2535 = vld [vmem:[%s5 + $0x160] sm:$0xff]
    %v2536 = vld [vmem:[%s5 + $0x168] sm:$0xff]
    %v2537 = vld [vmem:[%s5 + $0x170] sm:$0xff]
    %v2538 = vld [vmem:[%s5 + $0x178] sm:$0xff]
    %2540 = vset.pattern.permute.xlu0 0
    %2541 = vperm.xlu0 %2540, %v2491
    %v2542 = vpop.permute.xlu0 %2541
    %2545 = vset.pattern.permute.xlu0 0
    %2546 = vperm.xlu0 %2545, %v2492
    %v2547 = vpop.permute.xlu0 %2546
    %2550 = vset.pattern.permute.xlu0 0
    %2551 = vperm.xlu0 %2550, %v2493
    %v2552 = vpop.permute.xlu0 %2551
    %2555 = vset.pattern.permute.xlu0 0
    %2556 = vperm.xlu0 %2555, %v2494
    %v2557 = vpop.permute.xlu0 %2556
    %2560 = vset.pattern.permute.xlu0 0
    %2561 = vperm.xlu0 %2560, %v2495
    %v2562 = vpop.permute.xlu0 %2561
    %2565 = vset.pattern.permute.xlu0 0
    %2566 = vperm.xlu0 %2565, %v2496
    %v2567 = vpop.permute.xlu0 %2566
    %2570 = vset.pattern.permute.xlu0 0
    %2571 = vperm.xlu0 %2570, %v2497
    %v2572 = vpop.permute.xlu0 %2571
    %2575 = vset.pattern.permute.xlu0 0
    %2576 = vperm.xlu0 %2575, %v2498
    %v2577 = vpop.permute.xlu0 %2576
    %2580 = vset.pattern.permute.xlu0 0
    %2581 = vperm.xlu0 %2580, %v2499
    %v2582 = vpop.permute.xlu0 %2581
    %2585 = vset.pattern.permute.xlu0 0
    %2586 = vperm.xlu0 %2585, %v2500
    %v2587 = vpop.permute.xlu0 %2586
    %2590 = vset.pattern.permute.xlu0 0
    %2591 = vperm.xlu0 %2590, %v2501
    %v2592 = vpop.permute.xlu0 %2591
    %2595 = vset.pattern.permute.xlu0 0
    %2596 = vperm.xlu0 %2595, %v2502
    %v2597 = vpop.permute.xlu0 %2596
    %2600 = vset.pattern.permute.xlu0 0
    %2601 = vperm.xlu0 %2600, %v2503
    %v2602 = vpop.permute.xlu0 %2601
    %2605 = vset.pattern.permute.xlu0 0
    %2606 = vperm.xlu0 %2605, %v2504
    %v2607 = vpop.permute.xlu0 %2606
    %2610 = vset.pattern.permute.xlu0 0
    %2611 = vperm.xlu0 %2610, %v2505
    %v2612 = vpop.permute.xlu0 %2611
    %2615 = vset.pattern.permute.xlu0 0
    %2616 = vperm.xlu0 %2615, %v2506
    %v2617 = vpop.permute.xlu0 %2616
    %2620 = vset.pattern.permute.xlu0 0
    %2621 = vperm.xlu0 %2620, %v2507
    %v2622 = vpop.permute.xlu0 %2621
    %2625 = vset.pattern.permute.xlu0 0
    %2626 = vperm.xlu0 %2625, %v2508
    %v2627 = vpop.permute.xlu0 %2626
    %2630 = vset.pattern.permute.xlu0 0
    %2631 = vperm.xlu0 %2630, %v2509
    %v2632 = vpop.permute.xlu0 %2631
    %2635 = vset.pattern.permute.xlu0 0
    %2636 = vperm.xlu0 %2635, %v2510
    %v2637 = vpop.permute.xlu0 %2636
    %2640 = vset.pattern.permute.xlu0 0
    %2641 = vperm.xlu0 %2640, %v2511
    %v2642 = vpop.permute.xlu0 %2641
    %2645 = vset.pattern.permute.xlu0 0
    %2646 = vperm.xlu0 %2645, %v2512
    %v2647 = vpop.permute.xlu0 %2646
    %2650 = vset.pattern.permute.xlu0 0
    %2651 = vperm.xlu0 %2650, %v2513
    %v2652 = vpop.permute.xlu0 %2651
    %2655 = vset.pattern.permute.xlu0 0
    %2656 = vperm.xlu0 %2655, %v2514
    %v2657 = vpop.permute.xlu0 %2656
    %2660 = vset.pattern.permute.xlu0 0
    %2661 = vperm.xlu0 %2660, %v2515
    %v2662 = vpop.permute.xlu0 %2661
    %2665 = vset.pattern.permute.xlu0 0
    %2666 = vperm.xlu0 %2665, %v2516
    %v2667 = vpop.permute.xlu0 %2666
    %2670 = vset.pattern.permute.xlu0 0
    %2671 = vperm.xlu0 %2670, %v2517
    %v2672 = vpop.permute.xlu0 %2671
    %2675 = vset.pattern.permute.xlu0 0
    %2676 = vperm.xlu0 %2675, %v2518
    %v2677 = vpop.permute.xlu0 %2676
    %2680 = vset.pattern.permute.xlu0 0
    %2681 = vperm.xlu0 %2680, %v2519
    %v2682 = vpop.permute.xlu0 %2681
    %2685 = vset.pattern.permute.xlu0 0
    %2686 = vperm.xlu0 %2685, %v2520
    %v2687 = vpop.permute.xlu0 %2686
    %2690 = vset.pattern.permute.xlu0 0
    %2691 = vperm.xlu0 %2690, %v2521
    %v2692 = vpop.permute.xlu0 %2691
    %2695 = vset.pattern.permute.xlu0 0
    %2696 = vperm.xlu0 %2695, %v2522
    %v2697 = vpop.permute.xlu0 %2696
    %2700 = vset.pattern.permute.xlu0 0
    %2701 = vperm.xlu0 %2700, %v2523
    %v2702 = vpop.permute.xlu0 %2701
    %2705 = vset.pattern.permute.xlu0 0
    %2706 = vperm.xlu0 %2705, %v2524
    %v2707 = vpop.permute.xlu0 %2706
    %2710 = vset.pattern.permute.xlu0 0
    %2711 = vperm.xlu0 %2710, %v2525
    %v2712 = vpop.permute.xlu0 %2711
    %2715 = vset.pattern.permute.xlu0 0
    %2716 = vperm.xlu0 %2715, %v2526
    %v2717 = vpop.permute.xlu0 %2716
    %2720 = vset.pattern.permute.xlu0 0
    %2721 = vperm.xlu0 %2720, %v2527
    %v2722 = vpop.permute.xlu0 %2721
    %2725 = vset.pattern.permute.xlu0 0
    %2726 = vperm.xlu0 %2725, %v2528
    %v2727 = vpop.permute.xlu0 %2726
    %2730 = vset.pattern.permute.xlu0 0
    %2731 = vperm.xlu0 %2730, %v2529
    %v2732 = vpop.permute.xlu0 %2731
    %2735 = vset.pattern.permute.xlu0 0
    %2736 = vperm.xlu0 %2735, %v2530
    %v2737 = vpop.permute.xlu0 %2736
    %2740 = vset.pattern.permute.xlu0 0
    %2741 = vperm.xlu0 %2740, %v2531
    %v2742 = vpop.permute.xlu0 %2741
    %2745 = vset.pattern.permute.xlu0 0
    %2746 = vperm.xlu0 %2745, %v2532
    %v2747 = vpop.permute.xlu0 %2746
    %2750 = vset.pattern.permute.xlu0 0
    %2751 = vperm.xlu0 %2750, %v2533
    %v2752 = vpop.permute.xlu0 %2751
    %2755 = vset.pattern.permute.xlu0 0
    %2756 = vperm.xlu0 %2755, %v2534
    %v2757 = vpop.permute.xlu0 %2756
    %2760 = vset.pattern.permute.xlu0 0
    %2761 = vperm.xlu0 %2760, %v2535
    %v2762 = vpop.permute.xlu0 %2761
    %2765 = vset.pattern.permute.xlu0 0
    %2766 = vperm.xlu0 %2765, %v2536
    %v2767 = vpop.permute.xlu0 %2766
    %2770 = vset.pattern.permute.xlu0 0
    %2771 = vperm.xlu0 %2770, %v2537
    %v2772 = vpop.permute.xlu0 %2771
    %2775 = vset.pattern.permute.xlu0 0
    %2776 = vperm.xlu0 %2775, %v2538
    %v2777 = vpop.permute.xlu0 %2776
    %v2779 = vmul.f32 %v2443, %v2542
    %v2780 = vmul.f32 %v2444, %v2547
    %v2781 = vmul.f32 %v2445, %v2552
    %v2782 = vmul.f32 %v2446, %v2557
    %v2783 = vmul.f32 %v2447, %v2562
    %v2784 = vmul.f32 %v2448, %v2567
    %v2785 = vmul.f32 %v2449, %v2572
    %v2786 = vmul.f32 %v2450, %v2577
    %v2787 = vmul.f32 %v2451, %v2582
    %v2788 = vmul.f32 %v2452, %v2587
    %v2789 = vmul.f32 %v2453, %v2592
    %v2790 = vmul.f32 %v2454, %v2597
    %v2791 = vmul.f32 %v2455, %v2602
    %v2792 = vmul.f32 %v2456, %v2607
    %v2793 = vmul.f32 %v2457, %v2612
    %v2794 = vmul.f32 %v2458, %v2617
    %v2795 = vmul.f32 %v2459, %v2622
    %v2796 = vmul.f32 %v2460, %v2627
    %v2797 = vmul.f32 %v2461, %v2632
    %v2798 = vmul.f32 %v2462, %v2637
    %v2799 = vmul.f32 %v2463, %v2642
    %v2800 = vmul.f32 %v2464, %v2647
    %v2801 = vmul.f32 %v2465, %v2652
    %v2802 = vmul.f32 %v2466, %v2657
    %v2803 = vmul.f32 %v2467, %v2662
    %v2804 = vmul.f32 %v2468, %v2667
    %v2805 = vmul.f32 %v2469, %v2672
    %v2806 = vmul.f32 %v2470, %v2677
    %v2807 = vmul.f32 %v2471, %v2682
    %v2808 = vmul.f32 %v2472, %v2687
    %v2809 = vmul.f32 %v2473, %v2692
    %v2810 = vmul.f32 %v2474, %v2697
    %v2811 = vmul.f32 %v2475, %v2702
    %v2812 = vmul.f32 %v2476, %v2707
    %v2813 = vmul.f32 %v2477, %v2712
    %v2814 = vmul.f32 %v2478, %v2717
    %v2815 = vmul.f32 %v2479, %v2722
    %v2816 = vmul.f32 %v2480, %v2727
    %v2817 = vmul.f32 %v2481, %v2732
    %v2818 = vmul.f32 %v2482, %v2737
    %v2819 = vmul.f32 %v2483, %v2742
    %v2820 = vmul.f32 %v2484, %v2747
    %v2821 = vmul.f32 %v2485, %v2752
    %v2822 = vmul.f32 %v2486, %v2757
    %v2823 = vmul.f32 %v2487, %v2762
    %v2824 = vmul.f32 %v2488, %v2767
    %v2825 = vmul.f32 %v2489, %v2772
    %v2826 = vmul.f32 %v2490, %v2777
    %vm2827 = vcmask 15360
    %v2828 = vsel %vm2827, %v2779, 0.0
    %v2829 = vsel %vm2827, %v2780, 0.0
    %v2830 = vadd.f32 %v2828, %v2829
    %v2831 = vsel %vm2827, %v2781, 0.0
    %v2832 = vadd.f32 %v2830, %v2831
    %v2833 = vsel %vm2827, %v2782, 0.0
    %v2834 = vadd.f32 %v2832, %v2833
    %v2835 = vsel %vm2827, %v2783, 0.0
    %v2836 = vadd.f32 %v2834, %v2835
    %v2837 = vsel %vm2827, %v2784, 0.0
    %v2838 = vadd.f32 %v2836, %v2837
    %v2839 = vsel %vm2827, %v2785, 0.0
    %v2840 = vadd.f32 %v2838, %v2839
    %v2841 = vsel %vm2827, %v2786, 0.0
    %v2842 = vadd.f32 %v2840, %v2841
    %v2843 = vsel %vm2827, %v2787, 0.0
    %v2844 = vadd.f32 %v2842, %v2843
    %v2845 = vsel %vm2827, %v2788, 0.0
    %v2846 = vadd.f32 %v2844, %v2845
    %v2847 = vsel %vm2827, %v2789, 0.0
    %v2848 = vadd.f32 %v2846, %v2847
    %v2849 = vsel %vm2827, %v2790, 0.0
    %v2850 = vadd.f32 %v2848, %v2849
    %v2851 = vsel %vm2827, %v2791, 0.0
    %v2852 = vadd.f32 %v2850, %v2851
    %v2853 = vsel %vm2827, %v2792, 0.0
    %v2854 = vadd.f32 %v2852, %v2853
    %v2855 = vsel %vm2827, %v2793, 0.0
    %v2856 = vadd.f32 %v2854, %v2855
    %v2857 = vsel %vm2827, %v2794, 0.0
    %v2858 = vadd.f32 %v2856, %v2857
    %v2859 = vsel %vm2827, %v2795, 0.0
    %v2860 = vadd.f32 %v2858, %v2859
    %v2861 = vsel %vm2827, %v2796, 0.0
    %v2862 = vadd.f32 %v2860, %v2861
    %v2863 = vsel %vm2827, %v2797, 0.0
    %v2864 = vadd.f32 %v2862, %v2863
    %v2865 = vsel %vm2827, %v2798, 0.0
    %v2866 = vadd.f32 %v2864, %v2865
    %v2867 = vsel %vm2827, %v2799, 0.0
    %v2868 = vadd.f32 %v2866, %v2867
    %v2869 = vsel %vm2827, %v2800, 0.0
    %v2870 = vadd.f32 %v2868, %v2869
    %v2871 = vsel %vm2827, %v2801, 0.0
    %v2872 = vadd.f32 %v2870, %v2871
    %v2873 = vsel %vm2827, %v2802, 0.0
    %v2874 = vadd.f32 %v2872, %v2873
    %v2875 = vsel %vm2827, %v2803, 0.0
    %v2876 = vadd.f32 %v2874, %v2875
    %v2877 = vsel %vm2827, %v2804, 0.0
    %v2878 = vadd.f32 %v2876, %v2877
    %v2879 = vsel %vm2827, %v2805, 0.0
    %v2880 = vadd.f32 %v2878, %v2879
    %v2881 = vsel %vm2827, %v2806, 0.0
    %v2882 = vadd.f32 %v2880, %v2881
    %v2883 = vsel %vm2827, %v2807, 0.0
    %v2884 = vadd.f32 %v2882, %v2883
    %v2885 = vsel %vm2827, %v2808, 0.0
    %v2886 = vadd.f32 %v2884, %v2885
    %v2887 = vsel %vm2827, %v2809, 0.0
    %v2888 = vadd.f32 %v2886, %v2887
    %v2889 = vsel %vm2827, %v2810, 0.0
    %v2890 = vadd.f32 %v2888, %v2889
    %v2891 = vsel %vm2827, %v2811, 0.0
    %v2892 = vadd.f32 %v2890, %v2891
    %v2893 = vsel %vm2827, %v2812, 0.0
    %v2894 = vadd.f32 %v2892, %v2893
    %v2895 = vsel %vm2827, %v2813, 0.0
    %v2896 = vadd.f32 %v2894, %v2895
    %v2897 = vsel %vm2827, %v2814, 0.0
    %v2898 = vadd.f32 %v2896, %v2897
    %v2899 = vsel %vm2827, %v2815, 0.0
    %v2900 = vadd.f32 %v2898, %v2899
    %v2901 = vsel %vm2827, %v2816, 0.0
    %v2902 = vadd.f32 %v2900, %v2901
    %v2903 = vsel %vm2827, %v2817, 0.0
    %v2904 = vadd.f32 %v2902, %v2903
    %v2905 = vsel %vm2827, %v2818, 0.0
    %v2906 = vadd.f32 %v2904, %v2905
    %v2907 = vsel %vm2827, %v2819, 0.0
    %v2908 = vadd.f32 %v2906, %v2907
    %v2909 = vsel %vm2827, %v2820, 0.0
    %v2910 = vadd.f32 %v2908, %v2909
    %v2911 = vsel %vm2827, %v2821, 0.0
    %v2912 = vadd.f32 %v2910, %v2911
    %v2913 = vsel %vm2827, %v2822, 0.0
    %v2914 = vadd.f32 %v2912, %v2913
    %v2915 = vsel %vm2827, %v2823, 0.0
    %v2916 = vadd.f32 %v2914, %v2915
    %v2917 = vsel %vm2827, %v2824, 0.0
    %v2918 = vadd.f32 %v2916, %v2917
    %v2919 = vsel %vm2827, %v2825, 0.0
    %v2920 = vadd.f32 %v2918, %v2919
    %v2921 = vsel %vm2827, %v2826, 0.0
    %v2922 = vadd.f32 %v2920, %v2921
    %v2923 = vrot.slane %v2922, 4
    %v2924 = vadd.f32 %v2922, %v2923
    %v2925 = vrot.slane %v2924, 2
    %v2926 = vadd.f32 %v2924, %v2925
    %v2927 = vrot.slane %v2926, 1
    %v2928 = vadd.f32 %v2926, %v2927
    %v2929 = vld [vmem:[#allocation2] sm:$0x1]
    %2931 = vset.pattern.permute.xlu0 0
    %2932 = vperm.xlu0 %2931, %v2929
    %v2933 = vpop.permute.xlu0 %2932
    %v2935 = vlaneseq
    %v2936 = vshrl.u32 %v2935, 7
    %v2937 = vsub.s32 0, %v2936
    %v2938 = vrot.slane %v2933, %v2937
    %v2939 = vadd.f32 %v2928, %v2938
    %vm2940 = vcmask 8192
    %2941 = vst.msk [vmem:[#allocation3] sm:$0x1] %vm2940, %v2939
    // Predicated region
    $region30: #{tpu_custom_call.1} parent=1 // pred_check
      _
    $region31: #{tpu_custom_call.1} parent=1 // pred_check_branch
      %2943 = sbr.rel (0) target = $region33
    $region32: #{tpu_custom_call.1} parent=1 // pred_region
      %s2945 = ssub.s32 16, 16
      %2946 = vsyncadd [#allocation4], %s2945
      %s2948 = sshll.u32 [#allocation3], 4
      %s2949 = int_to_ptr.vmem [resolvable:$true] %s2948
      %2951 = dma.vmem_to_hbm [thread:$0]  %s2949, 16, %s7, [#allocation4]
    $region33: #{tpu_custom_call.1} parent=1 // pred_fallthru
      _
    // Predicated region
    $region34: #{tpu_custom_call.1} parent=1 // pred_check
      _
    $region35: #{tpu_custom_call.1} parent=1 // pred_check_branch
      %2953 = sbr.rel (0) target = $region37
    $region36: #{tpu_custom_call.1} parent=1 // pred_region
      %2954 = dma.done [#allocation4], 16
    $region37: #{tpu_custom_call.1} parent=1 // pred_fallthru
      _
    %2955 = vsyncpa [#allocation4], 1

</llo_original>
